<compile_context>
chip_gen: v7x
topology: tpu7x:2x2x1
jax: 0.10.0
libtpu: 0.0.40
codegen_flags: <defaults>
</compile_context>

<pallas_src>
import numpy as np
import jax
import jax.numpy as jnp
from jax import lax
from jax.experimental import pallas as pl
from jax.experimental.pallas import tpu as pltpu

# ----------------------------- config -----------------------------
BSZ = 2
D_MODEL = 7                     # forced by LayerNorm(d_model) over the final length (see header)
L_IN = 1                        # forced by the residual broadcast
KSIZE = 3
PAD = 2
N_CONV = 3
L_OUT = L_IN + N_CONV * (2 * PAD - KSIZE + 1)   # 1 + 3*2 = 7
DROPOUT = 0.1                   # identity in eval mode
LN_EPS = 1e-5

CP = 8                          # channels padded 7 -> 8 per batch (sublane-tile alignment)
BCP = BSZ * CP                  # 16 rows: batch folded onto the sublane axis
KBCP = KSIZE * BCP              # 48: contraction dim of the fused 3-tap matmul
P_ROWS = N_CONV * BCP + 1       # 49: 3 x 16 weight rows + 1 LayerNorm row
P_COLS = KBCP + 1               # 49: 48 tap-weight cols + 1 bias col


# ----------------------------- Pallas kernel -----------------------------
def residual_block_kernel(x_ref, p_ref, o_ref):
    """Fused [ReLU -> Conv1d(k=3, pad=2)] x3 + residual + LayerNorm for all batch elements.

    x_ref : (16, L_in)   input, batch folded onto sublanes; channel rows 7/15 are zero padding
    p_ref : (49, 49)     single packed param operand:
                           rows l*16:(l+1)*16, cols  0:48  = per-layer fused tap weights
                           rows l*16:(l+1)*16, col  48:49  = per-layer bias column
                           row  48,            cols  0:7   = LayerNorm weight
                           row  48,            cols  7:14  = LayerNorm bias
    o_ref : (16, L_out)
    """
    P = p_ref[...]                                  # (49, 49): tiny, lives in a few vregs
    x0 = x_ref[...]                                 # (16, L_in)
    # First CoreNet module is nn.ReLU(inplace=True): it rewrites `inp`,
    # so the residual sees relu(inp).
    x_res = jnp.maximum(x0, 0.0)

    zpad = jnp.zeros((BCP, PAD), jnp.float32)       # hoisted out of the layer loop

    h = x_res
    L = L_IN
    for l in range(N_CONV):
        if l > 0:
            h = jnp.maximum(h, 0.0)                              # ReLU before every conv
        hp = jnp.concatenate([zpad, h, zpad], axis=1)            # (16, L+4): zero padding=2
        L = L + 2 * PAD - KSIZE + 1                              # conv output length (+2)
        # All 3 taps fused into ONE matmul: stack the shifted slices along sublanes.
        # Pieces are 16 rows each (offsets 0/16/32), so the concat is fully 8-aligned.
        stk = jnp.concatenate([hp[:, k:k + L] for k in range(KSIZE)], axis=0)   # (48, L)
        Wl = P[l * BCP:(l + 1) * BCP, :KBCP]                     # (16, 48) block-diag tap weights
        bl = P[l * BCP:(l + 1) * BCP, KBCP:KBCP + 1]             # (16, 1)  bias
        h = jnp.dot(Wl, stk, precision=lax.Precision.HIGHEST,
                    preferred_element_type=jnp.float32) + bl     # (16, L)

    z = h + x_res                                                # residual (broadcasts over length)
    mu = jnp.mean(z, axis=-1, keepdims=True)                     # LayerNorm over last dim (= 7)
    var = jnp.mean((z - mu) ** 2, axis=-1, keepdims=True)
    g = P[N_CONV * BCP:N_CONV * BCP + 1, :L_OUT]                 # (1, 7) LN weight
    beta = P[N_CONV * BCP:N_CONV * BCP + 1, L_OUT:2 * L_OUT]     # (1, 7) LN bias
    o_ref[...] = (z - mu) * lax.rsqrt(var + LN_EPS) * g + beta


# ----------------------------- one-time parameter packing (init time, NOT per call) -----------
def pack_params(params):
    """Repack PyTorch-layout params into one (49, 49) f32 operand (single DMA per forward)."""
    w = params["conv_w"]                    # (N_CONV, C, C, K)
    b = params["conv_b"]                    # (N_CONV, C)
    eye_b = jnp.eye(BSZ, dtype=jnp.float32)
    layer_rows = []
    for l in range(N_CONV):
        taps = []
        for k in range(KSIZE):
            wk = jnp.zeros((CP, CP), jnp.float32).at[:D_MODEL, :D_MODEL].set(w[l, :, :, k])
            taps.append(jnp.kron(eye_b, wk))                       # (16, 16) block-diag over batch
        bl = jnp.zeros((CP,), jnp.float32).at[:D_MODEL].set(b[l])
        b_col = jnp.tile(bl, (BSZ,)).reshape(BCP, 1)               # (16, 1), zero on pad channels
        layer_rows.append(jnp.concatenate(taps + [b_col], axis=1)) # (16, 49)
    w_all = jnp.concatenate(layer_rows, axis=0)                    # (48, 49)
    ln_row = (jnp.zeros((1, P_COLS), jnp.float32)
              .at[0, :L_OUT].set(params["ln_g"])
              .at[0, L_OUT:2 * L_OUT].set(params["ln_b"]))         # (1, 49)
    return jnp.concatenate([w_all, ln_row], axis=0)                # (49, 49)


# ----------------------------- wrapper (per-call path) -----------------------------
def residual_block_forward(inp, packed):
    """inp: (B, d_model, L_in) -> (B, d_model, L_in + 6), matching the PyTorch module in eval mode."""
    B, C, L = inp.shape
    assert (B, C, L) == (BSZ, D_MODEL, L_IN), \
        "kernel is specialized to the shapes the module's forward implies (B=2, d_model=7, L_in=1)"
    assert packed.shape == (P_ROWS, P_COLS)

    # Pad channels 7 -> 8 per batch (zero rows), fold batch onto sublanes: (16, L_in).
    x16 = jnp.pad(inp, ((0, 0), (0, CP - C), (0, 0))).reshape(B * CP, L)

    vmem = pl.BlockSpec(memory_space=pltpu.MemorySpace.VMEM)
    out16 = pl.pallas_call(
        residual_block_kernel,
        out_shape=jax.ShapeDtypeStruct((B * CP, L_OUT), jnp.float32),
        in_specs=[vmem, vmem],
        out_specs=vmem,
    )(x16, packed)
    return out16.reshape(B, CP, L_OUT)[:, :C, :]


# ----------------------------- pure-jnp reference (self-check) -----------------------------
def residual_block_reference(inp, params):
    x = jnp.maximum(inp, 0.0)            # inplace ReLU also rewrites `inp`
    x_res = x
    for l in range(N_CONV):
        if l > 0:
            x = jnp.maximum(x, 0.0)
        w = params["conv_w"][l]          # (Cout, Cin, K)
        b = params["conv_b"][l]          # (Cout,)
        xp = jnp.pad(x, ((0, 0), (0, 0), (PAD, PAD)))
        L = x.shape[-1] + 2 * PAD - KSIZE + 1
        x = b[None, :, None] + sum(
            jnp.einsum('oi,bil->bol', w[:, :, k], xp[:, :, k:k + L],
                       precision=lax.Precision.HIGHEST)
            for k in range(KSIZE))
    z = x + x_res
    mu = jnp.mean(z, axis=-1, keepdims=True)
    var = jnp.mean((z - mu) ** 2, axis=-1, keepdims=True)
    return (z - mu) * lax.rsqrt(var + LN_EPS) * params["ln_g"] + params["ln_b"]


# ----------------------------- params -----------------------------
def init_params(key):
    kw, kb = jax.random.split(key, 2)
    return {
        "conv_w": 0.2 * jax.random.normal(kw, (N_CONV, D_MODEL, D_MODEL, KSIZE), jnp.float32),
        "conv_b": 0.1 * jax.random.normal(kb, (N_CONV, D_MODEL), jnp.float32),
        "ln_g": jnp.ones((L_OUT,), jnp.float32),     # LayerNorm(d_model) default init
        "ln_b": jnp.zeros((L_OUT,), jnp.float32),
    }


# ----------------------------- main -----------------------------
if __name__ == "__main__":
    key = jax.random.PRNGKey(0)
    k_param, k_inp = jax.random.split(key)
    params = init_params(k_param)
    packed = pack_params(params)          # one-time repack, OUTSIDE the jitted per-call path
    inp = jax.random.normal(k_inp, (BSZ, D_MODEL, L_IN), jnp.float32)

    fwd = jax.jit(residual_block_forward)
    out = fwd(inp, packed)
    jax.block_until_ready(out)
    assert out.shape == (BSZ, D_MODEL, L_OUT)

    ref = residual_block_reference(inp, params)
    np.testing.assert_allclose(np.asarray(out), np.asarray(ref), rtol=1e-4, atol=1e-4)

    print("KERNEL_OK")
</pallas_src>

<mosaic_0001>
module attributes {stable_mosaic.version = 11 : i64} {
  func.func @residual_block_kernel(%arg0: memref<16x1xf32, #tpu.memory_space<vmem>>, %arg1: memref<49x49xf32, #tpu.memory_space<vmem>>, %arg2: memref<16x7xf32, #tpu.memory_space<vmem>>) attributes {dimension_semantics = [], scalar_prefetch = 0 : i64, scratch_operands = 0 : i64, tpu.core_type = #tpu.core_type<tc>} {
    %c0 = arith.constant 0 : index
    %c0_0 = arith.constant 0 : index
    %0 = vector.load %arg1[%c0, %c0_0] : memref<49x49xf32, #tpu.memory_space<vmem>>, vector<49x49xf32>
    %c0_1 = arith.constant 0 : index
    %c0_2 = arith.constant 0 : index
    %1 = vector.load %arg0[%c0_1, %c0_2] : memref<16x1xf32, #tpu.memory_space<vmem>>, vector<16x1xf32>
    %cst = arith.constant 0.000000e+00 : f32
    %2 = vector.broadcast %cst : f32 to vector<16x1xf32>
    %3 = arith.maximumf %1, %2 : vector<16x1xf32>
    %cst_3 = arith.constant 0.000000e+00 : f32
    %4 = vector.broadcast %cst_3 : f32 to vector<16x2xf32>
    %5 = tpu.concatenate %4, %3, %4 in 1 : vector<16x2xf32>, vector<16x1xf32>, vector<16x2xf32> -> vector<16x5xf32>
    %6 = vector.extract_strided_slice %5 {offsets = [0, 0], sizes = [16, 3], strides = [1, 1]} : vector<16x5xf32> to vector<16x3xf32>
    %7 = vector.extract_strided_slice %5 {offsets = [0, 1], sizes = [16, 3], strides = [1, 1]} : vector<16x5xf32> to vector<16x3xf32>
    %8 = vector.extract_strided_slice %5 {offsets = [0, 2], sizes = [16, 3], strides = [1, 1]} : vector<16x5xf32> to vector<16x3xf32>
    %9 = tpu.concatenate %6, %7, %8 in 0 : vector<16x3xf32>, vector<16x3xf32>, vector<16x3xf32> -> vector<48x3xf32>
    %10 = vector.extract_strided_slice %0 {offsets = [0, 0], sizes = [16, 48], strides = [1, 1]} : vector<49x49xf32> to vector<16x48xf32>
    %11 = vector.extract_strided_slice %0 {offsets = [0, 48], sizes = [16, 1], strides = [1, 1]} : vector<49x49xf32> to vector<16x1xf32>
    %cst_4 = arith.constant dense<0.000000e+00> : vector<16x3xf32>
    %12 = tpu.matmul %10, %9, %cst_4 {dimension_numbers = #tpu.dot_dimension_numbers<[1], [0], [0], [1], [0, 0, 1, 1], [], []>, precision = #tpu.contract_precision<fp32>} : vector<16x48xf32>, vector<48x3xf32>, vector<16x3xf32> -> vector<16x3xf32>
    %13 = vector.broadcast %11 : vector<16x1xf32> to vector<16x3xf32>
    %14 = arith.addf %12, %13 : vector<16x3xf32>
    %cst_5 = arith.constant 0.000000e+00 : f32
    %15 = vector.broadcast %cst_5 : f32 to vector<16x3xf32>
    %16 = arith.maximumf %14, %15 : vector<16x3xf32>
    %17 = tpu.concatenate %4, %16, %4 in 1 : vector<16x2xf32>, vector<16x3xf32>, vector<16x2xf32> -> vector<16x7xf32>
    %18 = vector.extract_strided_slice %17 {offsets = [0, 0], sizes = [16, 5], strides = [1, 1]} : vector<16x7xf32> to vector<16x5xf32>
    %19 = vector.extract_strided_slice %17 {offsets = [0, 1], sizes = [16, 5], strides = [1, 1]} : vector<16x7xf32> to vector<16x5xf32>
    %20 = vector.extract_strided_slice %17 {offsets = [0, 2], sizes = [16, 5], strides = [1, 1]} : vector<16x7xf32> to vector<16x5xf32>
    %21 = tpu.concatenate %18, %19, %20 in 0 : vector<16x5xf32>, vector<16x5xf32>, vector<16x5xf32> -> vector<48x5xf32>
    %22 = vector.extract_strided_slice %0 {offsets = [16, 0], sizes = [16, 48], strides = [1, 1]} : vector<49x49xf32> to vector<16x48xf32>
    %23 = vector.extract_strided_slice %0 {offsets = [16, 48], sizes = [16, 1], strides = [1, 1]} : vector<49x49xf32> to vector<16x1xf32>
    %cst_6 = arith.constant dense<0.000000e+00> : vector<16x5xf32>
    %24 = tpu.matmul %22, %21, %cst_6 {dimension_numbers = #tpu.dot_dimension_numbers<[1], [0], [0], [1], [0, 0, 1, 1], [], []>, precision = #tpu.contract_precision<fp32>} : vector<16x48xf32>, vector<48x5xf32>, vector<16x5xf32> -> vector<16x5xf32>
    %25 = vector.broadcast %23 : vector<16x1xf32> to vector<16x5xf32>
    %26 = arith.addf %24, %25 : vector<16x5xf32>
    %cst_7 = arith.constant 0.000000e+00 : f32
    %27 = vector.broadcast %cst_7 : f32 to vector<16x5xf32>
    %28 = arith.maximumf %26, %27 : vector<16x5xf32>
    %29 = tpu.concatenate %4, %28, %4 in 1 : vector<16x2xf32>, vector<16x5xf32>, vector<16x2xf32> -> vector<16x9xf32>
    %30 = vector.extract_strided_slice %29 {offsets = [0, 0], sizes = [16, 7], strides = [1, 1]} : vector<16x9xf32> to vector<16x7xf32>
    %31 = vector.extract_strided_slice %29 {offsets = [0, 1], sizes = [16, 7], strides = [1, 1]} : vector<16x9xf32> to vector<16x7xf32>
    %32 = vector.extract_strided_slice %29 {offsets = [0, 2], sizes = [16, 7], strides = [1, 1]} : vector<16x9xf32> to vector<16x7xf32>
    %33 = tpu.concatenate %30, %31, %32 in 0 : vector<16x7xf32>, vector<16x7xf32>, vector<16x7xf32> -> vector<48x7xf32>
    %34 = vector.extract_strided_slice %0 {offsets = [32, 0], sizes = [16, 48], strides = [1, 1]} : vector<49x49xf32> to vector<16x48xf32>
    %35 = vector.extract_strided_slice %0 {offsets = [32, 48], sizes = [16, 1], strides = [1, 1]} : vector<49x49xf32> to vector<16x1xf32>
    %cst_8 = arith.constant dense<0.000000e+00> : vector<16x7xf32>
    %36 = tpu.matmul %34, %33, %cst_8 {dimension_numbers = #tpu.dot_dimension_numbers<[1], [0], [0], [1], [0, 0, 1, 1], [], []>, precision = #tpu.contract_precision<fp32>} : vector<16x48xf32>, vector<48x7xf32>, vector<16x7xf32> -> vector<16x7xf32>
    %37 = vector.broadcast %35 : vector<16x1xf32> to vector<16x7xf32>
    %38 = arith.addf %36, %37 : vector<16x7xf32>
    %39 = vector.broadcast %3 : vector<16x1xf32> to vector<16x7xf32>
    %40 = arith.addf %38, %39 : vector<16x7xf32>
    %cst_9 = arith.constant dense<0.000000e+00> : vector<16xf32>
    %41 = vector.multi_reduction <add>, %40, %cst_9 [1] : vector<16x7xf32> to vector<16xf32>
    %42 = vector.shape_cast %41 : vector<16xf32> to vector<16x1xf32>
    %cst_10 = arith.constant 7.000000e+00 : f32
    %43 = vector.broadcast %cst_10 : f32 to vector<16x1xf32>
    %44 = arith.divf %42, %43 : vector<16x1xf32>
    %45 = vector.broadcast %44 : vector<16x1xf32> to vector<16x7xf32>
    %46 = arith.subf %40, %45 : vector<16x7xf32>
    %47 = arith.mulf %46, %46 : vector<16x7xf32>
    %cst_11 = arith.constant dense<0.000000e+00> : vector<16xf32>
    %48 = vector.multi_reduction <add>, %47, %cst_11 [1] : vector<16x7xf32> to vector<16xf32>
    %49 = vector.shape_cast %48 : vector<16xf32> to vector<16x1xf32>
    %cst_12 = arith.constant 7.000000e+00 : f32
    %50 = vector.broadcast %cst_12 : f32 to vector<16x1xf32>
    %51 = arith.divf %49, %50 : vector<16x1xf32>
    %52 = vector.extract_strided_slice %0 {offsets = [48, 0], sizes = [1, 7], strides = [1, 1]} : vector<49x49xf32> to vector<1x7xf32>
    %53 = vector.extract_strided_slice %0 {offsets = [48, 7], sizes = [1, 7], strides = [1, 1]} : vector<49x49xf32> to vector<1x7xf32>
    %54 = vector.broadcast %44 : vector<16x1xf32> to vector<16x7xf32>
    %55 = arith.subf %40, %54 : vector<16x7xf32>
    %cst_13 = arith.constant 9.99999974E-6 : f32
    %56 = vector.broadcast %cst_13 : f32 to vector<16x1xf32>
    %57 = arith.addf %51, %56 : vector<16x1xf32>
    %58 = math.rsqrt %57 : vector<16x1xf32>
    %59 = vector.broadcast %58 : vector<16x1xf32> to vector<16x7xf32>
    %60 = arith.mulf %55, %59 : vector<16x7xf32>
    %61 = vector.broadcast %52 : vector<1x7xf32> to vector<16x7xf32>
    %62 = arith.mulf %60, %61 : vector<16x7xf32>
    %63 = vector.broadcast %53 : vector<1x7xf32> to vector<16x7xf32>
    %64 = arith.addf %62, %63 : vector<16x7xf32>
    %c0_14 = arith.constant 0 : index
    %c0_15 = arith.constant 0 : index
    %65 = vector.load %arg2[%c0_14, %c0_15] : memref<16x7xf32, #tpu.memory_space<vmem>>, vector<16x7xf32>
    tpu.vector_store %arg2[%c0_14, %c0_15], %64 {strides = array<i32>} : memref<16x7xf32, #tpu.memory_space<vmem>>, vector<16x7xf32>,
    return
  }
}

</mosaic_0001>

<llo_original>
// kernel: residual_block_forward.1
$region0: #{residual_block_forward.1}
  #allocation0 [shape = 'u32[]', space=smem, size = 0x4, offset = 0x4, fixed_abs, tag = 'smem constant byte address 0x4 - core index']
  #allocation1 [shape = 'u32[144,128]{1,0:T(1,128)}', space=vmem, size = 0x12000, scoped, tag = 'internal scratch']
  %s0 = inlined_call_operand.vmem [shape: f32[16,1], index: 0, kind: input, shape index: {}]
  %s1 = inlined_call_operand.hbm [shape: f32[49,49], index: 1, kind: input, shape index: {}]
  %s2 = inlined_call_operand.vmem [shape: f32[16,7], index: 2, kind: output, shape index: {}]
  %s3 = sld [smem:[#allocation0]]
  $region22: #{residual_block_forward.1} parent=0
    _
  %s5 = ssub.s32 1, %s3
  %s6 = scalar_select 0, %s5, %s3
  $region1: #{residual_block_forward.1} parent=0
    #allocation2 [shape = 'u8[28672]{0}', space=vmem, size = 0x7000, scoped, tag = 'input window, operand 1, single buffered']
    #allocation3 [shape = 's32[1]{0}', space=sflag, size = 0x4, scoped, tag = 'scoped memory for residual_block_forward.1']
    %7 = vsyncpa [#allocation3], 0
    // Predicated region
    $region2: #{residual_block_forward.1} parent=1 // pred_check
      _
    $region3: #{residual_block_forward.1} parent=1 // pred_check_branch
      %9 = sbr.rel (0) target = $region5
    $region4: #{residual_block_forward.1} parent=1 // pred_region
      _
    $region5: #{residual_block_forward.1} parent=1 // pred_fallthru
      _
    // Predicated region
    $region6: #{residual_block_forward.1} parent=1 // pred_check
      _
    $region7: #{residual_block_forward.1} parent=1 // pred_check_branch
      %11 = sbr.rel (0) target = $region9
    $region8: #{residual_block_forward.1} parent=1 // pred_region
      %s13 = ssub.s32 896, 896
      %14 = vsyncadd [#allocation3], %s13
      %s15 = sshll.u32 [#allocation2], 4
      %s16 = int_to_ptr.vmem [resolvable:$true] %s15
      %21 = dma.hbm_to_vmem [thread:$0]  %s1, 896, %s16, [#allocation3], 128, 128, 8
    $region9: #{residual_block_forward.1} parent=1 // pred_fallthru
      _
    // Predicated region
    $region10: #{residual_block_forward.1} parent=1 // pred_check
      _
    $region11: #{residual_block_forward.1} parent=1 // pred_check_branch
      %23 = sbr.rel (0) target = $region13
    $region12: #{residual_block_forward.1} parent=1 // pred_region
      %24 = dma.done [#allocation3], 896
    $region13: #{residual_block_forward.1} parent=1 // pred_fallthru
      _
    %v25 = vld [vmem:[#allocation2] sm:$0xff]
    %v26 = vld [vmem:[#allocation2 + $0x8] sm:$0xff]
    %v27 = vld [vmem:[#allocation2 + $0x10] sm:$0xff]
    %v28 = vld [vmem:[#allocation2 + $0x18] sm:$0xff]
    %v29 = vld [vmem:[#allocation2 + $0x20] sm:$0xff]
    %v30 = vld [vmem:[#allocation2 + $0x28] sm:$0xff]
    %v31 = vld [vmem:[#allocation2 + $0x30] sm:$0x1]
    %v32 = vld [vmem:[%s0] sm:$0xff]
    %v33 = vld [vmem:[%s0 + $0x8] sm:$0xff]
    %v34 = vmax.f32 %v32, 0.0
    %v35 = vmax.f32 %v33, 0.0
    %38 = vrot.lane.b32.xlu0 %v34, 2
    %v39 = vpop.permute.xlu0 %38
    %40 = vrot.lane.b32.xlu0 %v35, 2
    %v41 = vpop.permute.xlu0 %40
    %vm44 = vcmask 15360
    %v45 = vsel %vm44, 0.0, %v39
    %v46 = vsel %vm44, 0.0, %v41
    %vm47 = vcmask 23552
    %v48 = vsel %vm47, %v45, 0.0
    %v49 = vsel %vm47, %v46, 0.0
    %52 = vrot.lane.b32.xlu0 %v48, 127
    %v53 = vpop.permute.xlu0 %52
    %54 = vrot.lane.b32.xlu0 %v49, 127
    %v55 = vpop.permute.xlu0 %54
    %58 = vrot.lane.b32.xlu0 %v48, 126
    %v59 = vpop.permute.xlu0 %58
    %60 = vrot.lane.b32.xlu0 %v49, 126
    %v61 = vpop.permute.xlu0 %60
    %65 = vset.pattern.permute.xlu0 48
    %66 = vperm.xlu0 %65, %v25
    %v67 = vpop.permute.xlu0 %66
    %70 = vset.pattern.permute.xlu0 48
    %71 = vperm.xlu0 %70, %v26
    %v72 = vpop.permute.xlu0 %71
    %vm74 = vcmask 392192
    %v75 = vsel %vm74, %v25, 0
    %v77 = vsel %vm74, %v26, 0
    %79 = vmatprep.subr.mxu0 0.0
    %v80 = vand.u32 %v48, 4294901760
    %81 = vmatpush1.msra.mxu0 %v80
    %82 = vmatprep.subr.mxu0 0.0
    %v83 = vand.u32 %v49, 4294901760
    %84 = vmatpush1.msra.mxu0 %v83
    %85 = vmatprep.subr.mxu0 0.0
    %v86 = vand.u32 %v53, 4294901760
    %87 = vmatpush1.msra.mxu0 %v86
    %88 = vmatprep.subr.mxu0 0.0
    %v89 = vand.u32 %v55, 4294901760
    %90 = vmatpush1.msra.mxu0 %v89
    %91 = vmatprep.subr.mxu0 0.0
    %v92 = vand.u32 %v59, 4294901760
    %93 = vmatpush1.msra.mxu0 %v92
    %94 = vmatprep.subr.mxu0 0.0
    %v95 = vand.u32 %v61, 4294901760
    %96 = vmatpush1.msra.mxu0 %v95
    %97 = vmatprep.subr.mxu0 0.0
    %98 = vmatpush1.msra.mxu0 0.0
    %99 = vmatprep.subr.mxu0 0.0
    %100 = vmatpush1.msra.mxu0 0.0
    %101 = vmatprep.subr.mxu0 0.0
    %102 = vmatpush1.msra.mxu0 0.0
    %103 = vmatprep.subr.mxu0 0.0
    %104 = vmatpush1.msra.mxu0 0.0
    %105 = vmatprep.subr.mxu0 0.0
    %106 = vmatpush1.msra.mxu0 0.0
    %107 = vmatprep.subr.mxu0 0.0
    %108 = vmatpush1.msra.mxu0 0.0
    %109 = vmatprep.subr.mxu0 0.0
    %110 = vmatpush1.msra.mxu0 0.0
    %111 = vmatprep.subr.mxu0 0.0
    %112 = vmatpush1.msra.mxu0 0.0
    %113 = vmatprep.subr.mxu0 0.0
    %114 = vmatpush1.msra.mxu0 0.0
    %115 = vmatprep.subr.mxu0 0.0
    %116 = vmatpush1.msra.mxu0 0.0
    %117 = vmatprep.subr.mxu0 0.0
    %118 = vmatpush1.msra.mxu0 0.0
    %119 = vmatprep.subr.mxu0 0.0
    %120 = vmatpush1.msra.mxu0 0.0
    %121 = vmatprep.subr.mxu0 0.0
    %122 = vmatpush1.msra.mxu0 0.0
    %123 = vmatprep.subr.mxu0 0.0
    %124 = vmatpush1.msra.mxu0 0.0
    %125 = vmatprep.subr.mxu0 0.0
    %126 = vmatpush1.msra.mxu0 0.0
    %127 = vmatprep.subr.mxu0 0.0
    %128 = vmatpush1.msra.mxu0 0.0
    %129 = vmatprep.subr.mxu0 0.0
    %130 = vmatpush1.msra.mxu0 0.0
    %131 = vmatprep.subr.mxu0 0.0
    %132 = vmatpush1.msra.mxu0 0.0
    %133 = vmatprep.subr.mxu0 0.0
    %134 = vmatpush1.msra.mxu0 0.0
    %135 = vmatprep.subr.mxu0 0.0
    %136 = vmatpush1.msra.mxu0 0.0
    %137 = vmatprep.subr.mxu0 0.0
    %138 = vmatpush1.msra.mxu0 0.0
    %139 = vmatprep.subr.mxu0 0.0
    %140 = vmatpush1.msra.mxu0 0.0
    %141 = vmatprep.subr.mxu0 0.0
    %142 = vmatpush1.msra.mxu0 0.0
    %143 = vmatprep.subr.mxu0 0.0
    %144 = vmatpush1.msra.mxu0 0.0
    %145 = vmatprep.subr.mxu0 0.0
    %146 = vmatpush1.msra.mxu0 0.0
    %147 = vmatprep.subr.mxu0 0.0
    %148 = vmatpush1.msra.mxu0 0.0
    %149 = vmatprep.mubr.f32.mxu0 0.0
    %v150 = vand.u32 %v75, 4294901760
    %v151 = vsub.f32 %v75, %v150
    %v152 = vand.u32 %v151, 4294901760
    %v153 = vsub.f32 %v151, %v152
    %v154 = vand.u32 %v153, 4294901760
    %155 = vmatmul.mubr.f32.gmra.mrb[0].mxu0 %v154
    %v156 = vpop.f32.mrb[0].mxu0
    %v157 = vadd.f32 %v67, %v156
    %v158 = vpop.f32.mrb[0].mxu0
    %159 = vmatprep.mubr.f32.mxu0 0.0
    %v160 = vand.u32 %v77, 4294901760
    %v161 = vsub.f32 %v77, %v160
    %v162 = vand.u32 %v161, 4294901760
    %v163 = vsub.f32 %v161, %v162
    %v164 = vand.u32 %v163, 4294901760
    %165 = vmatmul.mubr.f32.gmra.mrb[0].mxu0 %v164
    %v166 = vpop.f32.mrb[0].mxu0
    %v167 = vadd.f32 %v72, %v166
    %v168 = vpop.f32.mrb[0].mxu0
    %169 = vdwg.mxu0
    %170 = vmatprep.subr.mxu0 0.0
    %v171 = vand.u32 %v48, 4294901760
    %v172 = vsub.f32 %v48, %v171
    %v173 = vand.u32 %v172, 4294901760
    %v174 = vsub.f32 %v172, %v173
    %v175 = vand.u32 %v174, 4294901760
    %176 = vmatpush1.msra.mxu0 %v175
    %177 = vmatprep.subr.mxu0 0.0
    %v178 = vand.u32 %v49, 4294901760
    %v179 = vsub.f32 %v49, %v178
    %v180 = vand.u32 %v179, 4294901760
    %v181 = vsub.f32 %v179, %v180
    %v182 = vand.u32 %v181, 4294901760
    %183 = vmatpush1.msra.mxu0 %v182
    %184 = vmatprep.subr.mxu0 0.0
    %v185 = vand.u32 %v53, 4294901760
    %v186 = vsub.f32 %v53, %v185
    %v187 = vand.u32 %v186, 4294901760
    %v188 = vsub.f32 %v186, %v187
    %v189 = vand.u32 %v188, 4294901760
    %190 = vmatpush1.msra.mxu0 %v189
    %191 = vmatprep.subr.mxu0 0.0
    %v192 = vand.u32 %v55, 4294901760
    %v193 = vsub.f32 %v55, %v192
    %v194 = vand.u32 %v193, 4294901760
    %v195 = vsub.f32 %v193, %v194
    %v196 = vand.u32 %v195, 4294901760
    %197 = vmatpush1.msra.mxu0 %v196
    %198 = vmatprep.subr.mxu0 0.0
    %v199 = vand.u32 %v59, 4294901760
    %v200 = vsub.f32 %v59, %v199
    %v201 = vand.u32 %v200, 4294901760
    %v202 = vsub.f32 %v200, %v201
    %v203 = vand.u32 %v202, 4294901760
    %204 = vmatpush1.msra.mxu0 %v203
    %205 = vmatprep.subr.mxu0 0.0
    %v206 = vand.u32 %v61, 4294901760
    %v207 = vsub.f32 %v61, %v206
    %v208 = vand.u32 %v207, 4294901760
    %v209 = vsub.f32 %v207, %v208
    %v210 = vand.u32 %v209, 4294901760
    %211 = vmatpush1.msra.mxu0 %v210
    %212 = vmatprep.subr.mxu0 0.0
    %213 = vmatpush1.msra.mxu0 0.0
    %214 = vmatprep.subr.mxu0 0.0
    %215 = vmatpush1.msra.mxu0 0.0
    %216 = vmatprep.subr.mxu0 0.0
    %217 = vmatpush1.msra.mxu0 0.0
    %218 = vmatprep.subr.mxu0 0.0
    %219 = vmatpush1.msra.mxu0 0.0
    %220 = vmatprep.subr.mxu0 0.0
    %221 = vmatpush1.msra.mxu0 0.0
    %222 = vmatprep.subr.mxu0 0.0
    %223 = vmatpush1.msra.mxu0 0.0
    %224 = vmatprep.subr.mxu0 0.0
    %225 = vmatpush1.msra.mxu0 0.0
    %226 = vmatprep.subr.mxu0 0.0
    %227 = vmatpush1.msra.mxu0 0.0
    %228 = vmatprep.subr.mxu0 0.0
    %229 = vmatpush1.msra.mxu0 0.0
    %230 = vmatprep.subr.mxu0 0.0
    %231 = vmatpush1.msra.mxu0 0.0
    %232 = vmatprep.subr.mxu0 0.0
    %233 = vmatpush1.msra.mxu0 0.0
    %234 = vmatprep.subr.mxu0 0.0
    %235 = vmatpush1.msra.mxu0 0.0
    %236 = vmatprep.subr.mxu0 0.0
    %237 = vmatpush1.msra.mxu0 0.0
    %238 = vmatprep.subr.mxu0 0.0
    %239 = vmatpush1.msra.mxu0 0.0
    %240 = vmatprep.subr.mxu0 0.0
    %241 = vmatpush1.msra.mxu0 0.0
    %242 = vmatprep.subr.mxu0 0.0
    %243 = vmatpush1.msra.mxu0 0.0
    %244 = vmatprep.subr.mxu0 0.0
    %245 = vmatpush1.msra.mxu0 0.0
    %246 = vmatprep.subr.mxu0 0.0
    %247 = vmatpush1.msra.mxu0 0.0
    %248 = vmatprep.subr.mxu0 0.0
    %249 = vmatpush1.msra.mxu0 0.0
    %250 = vmatprep.subr.mxu0 0.0
    %251 = vmatpush1.msra.mxu0 0.0
    %252 = vmatprep.subr.mxu0 0.0
    %253 = vmatpush1.msra.mxu0 0.0
    %254 = vmatprep.subr.mxu0 0.0
    %255 = vmatpush1.msra.mxu0 0.0
    %256 = vmatprep.subr.mxu0 0.0
    %257 = vmatpush1.msra.mxu0 0.0
    %258 = vmatprep.subr.mxu0 0.0
    %259 = vmatpush1.msra.mxu0 0.0
    %260 = vmatprep.subr.mxu0 0.0
    %261 = vmatpush1.msra.mxu0 0.0
    %262 = vmatprep.subr.mxu0 0.0
    %263 = vmatpush1.msra.mxu0 0.0
    %264 = vmatprep.mubr.f32.mxu0 0.0
    %v265 = vand.u32 %v75, 4294901760
    %266 = vmatmul.mubr.f32.gmra.mrb[0].mxu0 %v265
    %v267 = vpop.f32.mrb[0].mxu0
    %v268 = vadd.f32 %v157, %v267
    %v269 = vpop.f32.mrb[0].mxu0
    %270 = vmatprep.mubr.f32.mxu0 0.0
    %v271 = vand.u32 %v77, 4294901760
    %272 = vmatmul.mubr.f32.gmra.mrb[0].mxu0 %v271
    %v273 = vpop.f32.mrb[0].mxu0
    %v274 = vadd.f32 %v167, %v273
    %v275 = vpop.f32.mrb[0].mxu0
    %276 = vdwg.mxu0
    %277 = vmatprep.subr.mxu0 0.0
    %v278 = vand.u32 %v48, 4294901760
    %v279 = vsub.f32 %v48, %v278
    %280 = vmatpush1.msra.mxu0 %v279
    %281 = vmatprep.subr.mxu0 0.0
    %v282 = vand.u32 %v49, 4294901760
    %v283 = vsub.f32 %v49, %v282
    %284 = vmatpush1.msra.mxu0 %v283
    %285 = vmatprep.subr.mxu0 0.0
    %v286 = vand.u32 %v53, 4294901760
    %v287 = vsub.f32 %v53, %v286
    %288 = vmatpush1.msra.mxu0 %v287
    %289 = vmatprep.subr.mxu0 0.0
    %v290 = vand.u32 %v55, 4294901760
    %v291 = vsub.f32 %v55, %v290
    %292 = vmatpush1.msra.mxu0 %v291
    %293 = vmatprep.subr.mxu0 0.0
    %v294 = vand.u32 %v59, 4294901760
    %v295 = vsub.f32 %v59, %v294
    %296 = vmatpush1.msra.mxu0 %v295
    %297 = vmatprep.subr.mxu0 0.0
    %v298 = vand.u32 %v61, 4294901760
    %v299 = vsub.f32 %v61, %v298
    %300 = vmatpush1.msra.mxu0 %v299
    %301 = vmatprep.subr.mxu0 0.0
    %302 = vmatpush1.msra.mxu0 0.0
    %303 = vmatprep.subr.mxu0 0.0
    %304 = vmatpush1.msra.mxu0 0.0
    %305 = vmatprep.subr.mxu0 0.0
    %306 = vmatpush1.msra.mxu0 0.0
    %307 = vmatprep.subr.mxu0 0.0
    %308 = vmatpush1.msra.mxu0 0.0
    %309 = vmatprep.subr.mxu0 0.0
    %310 = vmatpush1.msra.mxu0 0.0
    %311 = vmatprep.subr.mxu0 0.0
    %312 = vmatpush1.msra.mxu0 0.0
    %313 = vmatprep.subr.mxu0 0.0
    %314 = vmatpush1.msra.mxu0 0.0
    %315 = vmatprep.subr.mxu0 0.0
    %316 = vmatpush1.msra.mxu0 0.0
    %317 = vmatprep.subr.mxu0 0.0
    %318 = vmatpush1.msra.mxu0 0.0
    %319 = vmatprep.subr.mxu0 0.0
    %320 = vmatpush1.msra.mxu0 0.0
    %321 = vmatprep.subr.mxu0 0.0
    %322 = vmatpush1.msra.mxu0 0.0
    %323 = vmatprep.subr.mxu0 0.0
    %324 = vmatpush1.msra.mxu0 0.0
    %325 = vmatprep.subr.mxu0 0.0
    %326 = vmatpush1.msra.mxu0 0.0
    %327 = vmatprep.subr.mxu0 0.0
    %328 = vmatpush1.msra.mxu0 0.0
    %329 = vmatprep.subr.mxu0 0.0
    %330 = vmatpush1.msra.mxu0 0.0
    %331 = vmatprep.subr.mxu0 0.0
    %332 = vmatpush1.msra.mxu0 0.0
    %333 = vmatprep.subr.mxu0 0.0
    %334 = vmatpush1.msra.mxu0 0.0
    %335 = vmatprep.subr.mxu0 0.0
    %336 = vmatpush1.msra.mxu0 0.0
    %337 = vmatprep.subr.mxu0 0.0
    %338 = vmatpush1.msra.mxu0 0.0
    %339 = vmatprep.subr.mxu0 0.0
    %340 = vmatpush1.msra.mxu0 0.0
    %341 = vmatprep.subr.mxu0 0.0
    %342 = vmatpush1.msra.mxu0 0.0
    %343 = vmatprep.subr.mxu0 0.0
    %344 = vmatpush1.msra.mxu0 0.0
    %345 = vmatprep.subr.mxu0 0.0
    %346 = vmatpush1.msra.mxu0 0.0
    %347 = vmatprep.subr.mxu0 0.0
    %348 = vmatpush1.msra.mxu0 0.0
    %349 = vmatprep.subr.mxu0 0.0
    %350 = vmatpush1.msra.mxu0 0.0
    %351 = vmatprep.subr.mxu0 0.0
    %352 = vmatpush1.msra.mxu0 0.0
    %353 = vmatprep.mubr.f32.mxu0 0.0
    %v354 = vand.u32 %v75, 4294901760
    %v355 = vsub.f32 %v75, %v354
    %356 = vmatmul.mubr.f32.gmra.mrb[0].mxu0 %v355
    %v357 = vpop.f32.mrb[0].mxu0
    %v358 = vadd.f32 %v268, %v357
    %v359 = vpop.f32.mrb[0].mxu0
    %360 = vmatprep.mubr.f32.mxu0 0.0
    %v361 = vand.u32 %v77, 4294901760
    %v362 = vsub.f32 %v77, %v361
    %363 = vmatmul.mubr.f32.gmra.mrb[0].mxu0 %v362
    %v364 = vpop.f32.mrb[0].mxu0
    %v365 = vadd.f32 %v274, %v364
    %v366 = vpop.f32.mrb[0].mxu0
    %367 = vdwg.mxu0
    %368 = vmatprep.subr.mxu0 0.0
    %v369 = vand.u32 %v48, 4294901760
    %370 = vmatpush1.msra.mxu0 %v369
    %371 = vmatprep.subr.mxu0 0.0
    %v372 = vand.u32 %v49, 4294901760
    %373 = vmatpush1.msra.mxu0 %v372
    %374 = vmatprep.subr.mxu0 0.0
    %v375 = vand.u32 %v53, 4294901760
    %376 = vmatpush1.msra.mxu0 %v375
    %377 = vmatprep.subr.mxu0 0.0
    %v378 = vand.u32 %v55, 4294901760
    %379 = vmatpush1.msra.mxu0 %v378
    %380 = vmatprep.subr.mxu0 0.0
    %v381 = vand.u32 %v59, 4294901760
    %382 = vmatpush1.msra.mxu0 %v381
    %383 = vmatprep.subr.mxu0 0.0
    %v384 = vand.u32 %v61, 4294901760
    %385 = vmatpush1.msra.mxu0 %v384
    %386 = vmatprep.subr.mxu0 0.0
    %387 = vmatpush1.msra.mxu0 0.0
    %388 = vmatprep.subr.mxu0 0.0
    %389 = vmatpush1.msra.mxu0 0.0
    %390 = vmatprep.subr.mxu0 0.0
    %391 = vmatpush1.msra.mxu0 0.0
    %392 = vmatprep.subr.mxu0 0.0
    %393 = vmatpush1.msra.mxu0 0.0
    %394 = vmatprep.subr.mxu0 0.0
    %395 = vmatpush1.msra.mxu0 0.0
    %396 = vmatprep.subr.mxu0 0.0
    %397 = vmatpush1.msra.mxu0 0.0
    %398 = vmatprep.subr.mxu0 0.0
    %399 = vmatpush1.msra.mxu0 0.0
    %400 = vmatprep.subr.mxu0 0.0
    %401 = vmatpush1.msra.mxu0 0.0
    %402 = vmatprep.subr.mxu0 0.0
    %403 = vmatpush1.msra.mxu0 0.0
    %404 = vmatprep.subr.mxu0 0.0
    %405 = vmatpush1.msra.mxu0 0.0
    %406 = vmatprep.subr.mxu0 0.0
    %407 = vmatpush1.msra.mxu0 0.0
    %408 = vmatprep.subr.mxu0 0.0
    %409 = vmatpush1.msra.mxu0 0.0
    %410 = vmatprep.subr.mxu0 0.0
    %411 = vmatpush1.msra.mxu0 0.0
    %412 = vmatprep.subr.mxu0 0.0
    %413 = vmatpush1.msra.mxu0 0.0
    %414 = vmatprep.subr.mxu0 0.0
    %415 = vmatpush1.msra.mxu0 0.0
    %416 = vmatprep.subr.mxu0 0.0
    %417 = vmatpush1.msra.mxu0 0.0
    %418 = vmatprep.subr.mxu0 0.0
    %419 = vmatpush1.msra.mxu0 0.0
    %420 = vmatprep.subr.mxu0 0.0
    %421 = vmatpush1.msra.mxu0 0.0
    %422 = vmatprep.subr.mxu0 0.0
    %423 = vmatpush1.msra.mxu0 0.0
    %424 = vmatprep.subr.mxu0 0.0
    %425 = vmatpush1.msra.mxu0 0.0
    %426 = vmatprep.subr.mxu0 0.0
    %427 = vmatpush1.msra.mxu0 0.0
    %428 = vmatprep.subr.mxu0 0.0
    %429 = vmatpush1.msra.mxu0 0.0
    %430 = vmatprep.subr.mxu0 0.0
    %431 = vmatpush1.msra.mxu0 0.0
    %432 = vmatprep.subr.mxu0 0.0
    %433 = vmatpush1.msra.mxu0 0.0
    %434 = vmatprep.subr.mxu0 0.0
    %435 = vmatpush1.msra.mxu0 0.0
    %436 = vmatprep.subr.mxu0 0.0
    %437 = vmatpush1.msra.mxu0 0.0
    %438 = vmatprep.mubr.f32.mxu0 0.0
    %v439 = vand.u32 %v75, 4294901760
    %v440 = vsub.f32 %v75, %v439
    %v441 = vand.u32 %v440, 4294901760
    %442 = vmatmul.mubr.f32.gmra.mrb[0].mxu0 %v441
    %v443 = vpop.f32.mrb[0].mxu0
    %v444 = vadd.f32 %v358, %v443
    %v445 = vpop.f32.mrb[0].mxu0
    %446 = vmatprep.mubr.f32.mxu0 0.0
    %v447 = vand.u32 %v77, 4294901760
    %v448 = vsub.f32 %v77, %v447
    %v449 = vand.u32 %v448, 4294901760
    %450 = vmatmul.mubr.f32.gmra.mrb[0].mxu0 %v449
    %v451 = vpop.f32.mrb[0].mxu0
    %v452 = vadd.f32 %v365, %v451
    %v453 = vpop.f32.mrb[0].mxu0
    %454 = vdwg.mxu0
    %455 = vmatprep.subr.mxu0 0.0
    %v456 = vand.u32 %v48, 4294901760
    %v457 = vsub.f32 %v48, %v456
    %v458 = vand.u32 %v457, 4294901760
    %459 = vmatpush1.msra.mxu0 %v458
    %460 = vmatprep.subr.mxu0 0.0
    %v461 = vand.u32 %v49, 4294901760
    %v462 = vsub.f32 %v49, %v461
    %v463 = vand.u32 %v462, 4294901760
    %464 = vmatpush1.msra.mxu0 %v463
    %465 = vmatprep.subr.mxu0 0.0
    %v466 = vand.u32 %v53, 4294901760
    %v467 = vsub.f32 %v53, %v466
    %v468 = vand.u32 %v467, 4294901760
    %469 = vmatpush1.msra.mxu0 %v468
    %470 = vmatprep.subr.mxu0 0.0
    %v471 = vand.u32 %v55, 4294901760
    %v472 = vsub.f32 %v55, %v471
    %v473 = vand.u32 %v472, 4294901760
    %474 = vmatpush1.msra.mxu0 %v473
    %475 = vmatprep.subr.mxu0 0.0
    %v476 = vand.u32 %v59, 4294901760
    %v477 = vsub.f32 %v59, %v476
    %v478 = vand.u32 %v477, 4294901760
    %479 = vmatpush1.msra.mxu0 %v478
    %480 = vmatprep.subr.mxu0 0.0
    %v481 = vand.u32 %v61, 4294901760
    %v482 = vsub.f32 %v61, %v481
    %v483 = vand.u32 %v482, 4294901760
    %484 = vmatpush1.msra.mxu0 %v483
    %485 = vmatprep.subr.mxu0 0.0
    %486 = vmatpush1.msra.mxu0 0.0
    %487 = vmatprep.subr.mxu0 0.0
    %488 = vmatpush1.msra.mxu0 0.0
    %489 = vmatprep.subr.mxu0 0.0
    %490 = vmatpush1.msra.mxu0 0.0
    %491 = vmatprep.subr.mxu0 0.0
    %492 = vmatpush1.msra.mxu0 0.0
    %493 = vmatprep.subr.mxu0 0.0
    %494 = vmatpush1.msra.mxu0 0.0
    %495 = vmatprep.subr.mxu0 0.0
    %496 = vmatpush1.msra.mxu0 0.0
    %497 = vmatprep.subr.mxu0 0.0
    %498 = vmatpush1.msra.mxu0 0.0
    %499 = vmatprep.subr.mxu0 0.0
    %500 = vmatpush1.msra.mxu0 0.0
    %501 = vmatprep.subr.mxu0 0.0
    %502 = vmatpush1.msra.mxu0 0.0
    %503 = vmatprep.subr.mxu0 0.0
    %504 = vmatpush1.msra.mxu0 0.0
    %505 = vmatprep.subr.mxu0 0.0
    %506 = vmatpush1.msra.mxu0 0.0
    %507 = vmatprep.subr.mxu0 0.0
    %508 = vmatpush1.msra.mxu0 0.0
    %509 = vmatprep.subr.mxu0 0.0
    %510 = vmatpush1.msra.mxu0 0.0
    %511 = vmatprep.subr.mxu0 0.0
    %512 = vmatpush1.msra.mxu0 0.0
    %513 = vmatprep.subr.mxu0 0.0
    %514 = vmatpush1.msra.mxu0 0.0
    %515 = vmatprep.subr.mxu0 0.0
    %516 = vmatpush1.msra.mxu0 0.0
    %517 = vmatprep.subr.mxu0 0.0
    %518 = vmatpush1.msra.mxu0 0.0
    %519 = vmatprep.subr.mxu0 0.0
    %520 = vmatpush1.msra.mxu0 0.0
    %521 = vmatprep.subr.mxu0 0.0
    %522 = vmatpush1.msra.mxu0 0.0
    %523 = vmatprep.subr.mxu0 0.0
    %524 = vmatpush1.msra.mxu0 0.0
    %525 = vmatprep.subr.mxu0 0.0
    %526 = vmatpush1.msra.mxu0 0.0
    %527 = vmatprep.subr.mxu0 0.0
    %528 = vmatpush1.msra.mxu0 0.0
    %529 = vmatprep.subr.mxu0 0.0
    %530 = vmatpush1.msra.mxu0 0.0
    %531 = vmatprep.subr.mxu0 0.0
    %532 = vmatpush1.msra.mxu0 0.0
    %533 = vmatprep.subr.mxu0 0.0
    %534 = vmatpush1.msra.mxu0 0.0
    %535 = vmatprep.subr.mxu0 0.0
    %536 = vmatpush1.msra.mxu0 0.0
    %537 = vmatprep.mubr.f32.mxu0 0.0
    %v538 = vand.u32 %v75, 4294901760
    %539 = vmatmul.mubr.f32.gmra.mrb[0].mxu0 %v538
    %v540 = vpop.f32.mrb[0].mxu0
    %v541 = vadd.f32 %v444, %v540
    %v542 = vpop.f32.mrb[0].mxu0
    %543 = vmatprep.mubr.f32.mxu0 0.0
    %v544 = vand.u32 %v77, 4294901760
    %545 = vmatmul.mubr.f32.gmra.mrb[0].mxu0 %v544
    %v546 = vpop.f32.mrb[0].mxu0
    %v547 = vadd.f32 %v452, %v546
    %v548 = vpop.f32.mrb[0].mxu0
    %549 = vdwg.mxu0
    %550 = vmatprep.subr.mxu0 0.0
    %v551 = vand.u32 %v48, 4294901760
    %552 = vmatpush1.msra.mxu0 %v551
    %553 = vmatprep.subr.mxu0 0.0
    %v554 = vand.u32 %v49, 4294901760
    %555 = vmatpush1.msra.mxu0 %v554
    %556 = vmatprep.subr.mxu0 0.0
    %v557 = vand.u32 %v53, 4294901760
    %558 = vmatpush1.msra.mxu0 %v557
    %559 = vmatprep.subr.mxu0 0.0
    %v560 = vand.u32 %v55, 4294901760
    %561 = vmatpush1.msra.mxu0 %v560
    %562 = vmatprep.subr.mxu0 0.0
    %v563 = vand.u32 %v59, 4294901760
    %564 = vmatpush1.msra.mxu0 %v563
    %565 = vmatprep.subr.mxu0 0.0
    %v566 = vand.u32 %v61, 4294901760
    %567 = vmatpush1.msra.mxu0 %v566
    %568 = vmatprep.subr.mxu0 0.0
    %569 = vmatpush1.msra.mxu0 0.0
    %570 = vmatprep.subr.mxu0 0.0
    %571 = vmatpush1.msra.mxu0 0.0
    %572 = vmatprep.subr.mxu0 0.0
    %573 = vmatpush1.msra.mxu0 0.0
    %574 = vmatprep.subr.mxu0 0.0
    %575 = vmatpush1.msra.mxu0 0.0
    %576 = vmatprep.subr.mxu0 0.0
    %577 = vmatpush1.msra.mxu0 0.0
    %578 = vmatprep.subr.mxu0 0.0
    %579 = vmatpush1.msra.mxu0 0.0
    %580 = vmatprep.subr.mxu0 0.0
    %581 = vmatpush1.msra.mxu0 0.0
    %582 = vmatprep.subr.mxu0 0.0
    %583 = vmatpush1.msra.mxu0 0.0
    %584 = vmatprep.subr.mxu0 0.0
    %585 = vmatpush1.msra.mxu0 0.0
    %586 = vmatprep.subr.mxu0 0.0
    %587 = vmatpush1.msra.mxu0 0.0
    %588 = vmatprep.subr.mxu0 0.0
    %589 = vmatpush1.msra.mxu0 0.0
    %590 = vmatprep.subr.mxu0 0.0
    %591 = vmatpush1.msra.mxu0 0.0
    %592 = vmatprep.subr.mxu0 0.0
    %593 = vmatpush1.msra.mxu0 0.0
    %594 = vmatprep.subr.mxu0 0.0
    %595 = vmatpush1.msra.mxu0 0.0
    %596 = vmatprep.subr.mxu0 0.0
    %597 = vmatpush1.msra.mxu0 0.0
    %598 = vmatprep.subr.mxu0 0.0
    %599 = vmatpush1.msra.mxu0 0.0
    %600 = vmatprep.subr.mxu0 0.0
    %601 = vmatpush1.msra.mxu0 0.0
    %602 = vmatprep.subr.mxu0 0.0
    %603 = vmatpush1.msra.mxu0 0.0
    %604 = vmatprep.subr.mxu0 0.0
    %605 = vmatpush1.msra.mxu0 0.0
    %606 = vmatprep.subr.mxu0 0.0
    %607 = vmatpush1.msra.mxu0 0.0
    %608 = vmatprep.subr.mxu0 0.0
    %609 = vmatpush1.msra.mxu0 0.0
    %610 = vmatprep.subr.mxu0 0.0
    %611 = vmatpush1.msra.mxu0 0.0
    %612 = vmatprep.subr.mxu0 0.0
    %613 = vmatpush1.msra.mxu0 0.0
    %614 = vmatprep.subr.mxu0 0.0
    %615 = vmatpush1.msra.mxu0 0.0
    %616 = vmatprep.subr.mxu0 0.0
    %617 = vmatpush1.msra.mxu0 0.0
    %618 = vmatprep.subr.mxu0 0.0
    %619 = vmatpush1.msra.mxu0 0.0
    %620 = vmatprep.mubr.f32.mxu0 0.0
    %v621 = vand.u32 %v75, 4294901760
    %622 = vmatmul.mubr.f32.gmra.mrb[0].mxu0 %v621
    %v623 = vpop.f32.mrb[0].mxu0
    %v624 = vadd.f32 %v541, %v623
    %v625 = vpop.f32.mrb[0].mxu0
    %626 = vmatprep.mubr.f32.mxu0 0.0
    %v627 = vand.u32 %v77, 4294901760
    %628 = vmatmul.mubr.f32.gmra.mrb[0].mxu0 %v627
    %v629 = vpop.f32.mrb[0].mxu0
    %v630 = vadd.f32 %v547, %v629
    %v631 = vpop.f32.mrb[0].mxu0
    %632 = vdwg.mxu0
    %v633 = vmax.f32 %v624, 0.0
    %v634 = vmax.f32 %v630, 0.0
    %637 = vrot.lane.b32.xlu0 %v633, 2
    %v638 = vpop.permute.xlu0 %637
    %639 = vrot.lane.b32.xlu0 %v634, 2
    %v640 = vpop.permute.xlu0 %639
    %v643 = vsel %vm44, 0.0, %v638
    %v644 = vsel %vm44, 0.0, %v640
    %vm645 = vcmask 39936
    %v646 = vsel %vm645, %v643, 0.0
    %v647 = vsel %vm645, %v644, 0.0
    %650 = vrot.lane.b32.xlu0 %v646, 127
    %v651 = vpop.permute.xlu0 %650
    %652 = vrot.lane.b32.xlu0 %v647, 127
    %v653 = vpop.permute.xlu0 %652
    %656 = vrot.lane.b32.xlu0 %v646, 126
    %v657 = vpop.permute.xlu0 %656
    %658 = vrot.lane.b32.xlu0 %v647, 126
    %v659 = vpop.permute.xlu0 %658
    %663 = vset.pattern.permute.xlu0 48
    %664 = vperm.xlu0 %663, %v27
    %v665 = vpop.permute.xlu0 %664
    %668 = vset.pattern.permute.xlu0 48
    %669 = vperm.xlu0 %668, %v28
    %v670 = vpop.permute.xlu0 %669
    %v672 = vsel %vm74, %v27, 0
    %v674 = vsel %vm74, %v28, 0
    %676 = vmatprep.subr.mxu0 0.0
    %v677 = vand.u32 %v646, 4294901760
    %678 = vmatpush1.msra.mxu0 %v677
    %679 = vmatprep.subr.mxu0 0.0
    %v680 = vand.u32 %v647, 4294901760
    %681 = vmatpush1.msra.mxu0 %v680
    %682 = vmatprep.subr.mxu0 0.0
    %v683 = vand.u32 %v651, 4294901760
    %684 = vmatpush1.msra.mxu0 %v683
    %685 = vmatprep.subr.mxu0 0.0
    %v686 = vand.u32 %v653, 4294901760
    %687 = vmatpush1.msra.mxu0 %v686
    %688 = vmatprep.subr.mxu0 0.0
    %v689 = vand.u32 %v657, 4294901760
    %690 = vmatpush1.msra.mxu0 %v689
    %691 = vmatprep.subr.mxu0 0.0
    %v692 = vand.u32 %v659, 4294901760
    %693 = vmatpush1.msra.mxu0 %v692
    %694 = vmatprep.subr.mxu0 0.0
    %695 = vmatpush1.msra.mxu0 0.0
    %696 = vmatprep.subr.mxu0 0.0
    %697 = vmatpush1.msra.mxu0 0.0
    %698 = vmatprep.subr.mxu0 0.0
    %699 = vmatpush1.msra.mxu0 0.0
    %700 = vmatprep.subr.mxu0 0.0
    %701 = vmatpush1.msra.mxu0 0.0
    %702 = vmatprep.subr.mxu0 0.0
    %703 = vmatpush1.msra.mxu0 0.0
    %704 = vmatprep.subr.mxu0 0.0
    %705 = vmatpush1.msra.mxu0 0.0
    %706 = vmatprep.subr.mxu0 0.0
    %707 = vmatpush1.msra.mxu0 0.0
    %708 = vmatprep.subr.mxu0 0.0
    %709 = vmatpush1.msra.mxu0 0.0
    %710 = vmatprep.subr.mxu0 0.0
    %711 = vmatpush1.msra.mxu0 0.0
    %712 = vmatprep.subr.mxu0 0.0
    %713 = vmatpush1.msra.mxu0 0.0
    %714 = vmatprep.subr.mxu0 0.0
    %715 = vmatpush1.msra.mxu0 0.0
    %716 = vmatprep.subr.mxu0 0.0
    %717 = vmatpush1.msra.mxu0 0.0
    %718 = vmatprep.subr.mxu0 0.0
    %719 = vmatpush1.msra.mxu0 0.0
    %720 = vmatprep.subr.mxu0 0.0
    %721 = vmatpush1.msra.mxu0 0.0
    %722 = vmatprep.subr.mxu0 0.0
    %723 = vmatpush1.msra.mxu0 0.0
    %724 = vmatprep.subr.mxu0 0.0
    %725 = vmatpush1.msra.mxu0 0.0
    %726 = vmatprep.subr.mxu0 0.0
    %727 = vmatpush1.msra.mxu0 0.0
    %728 = vmatprep.subr.mxu0 0.0
    %729 = vmatpush1.msra.mxu0 0.0
    %730 = vmatprep.subr.mxu0 0.0
    %731 = vmatpush1.msra.mxu0 0.0
    %732 = vmatprep.subr.mxu0 0.0
    %733 = vmatpush1.msra.mxu0 0.0
    %734 = vmatprep.subr.mxu0 0.0
    %735 = vmatpush1.msra.mxu0 0.0
    %736 = vmatprep.subr.mxu0 0.0
    %737 = vmatpush1.msra.mxu0 0.0
    %738 = vmatprep.subr.mxu0 0.0
    %739 = vmatpush1.msra.mxu0 0.0
    %740 = vmatprep.subr.mxu0 0.0
    %741 = vmatpush1.msra.mxu0 0.0
    %742 = vmatprep.subr.mxu0 0.0
    %743 = vmatpush1.msra.mxu0 0.0
    %744 = vmatprep.subr.mxu0 0.0
    %745 = vmatpush1.msra.mxu0 0.0
    %746 = vmatprep.mubr.f32.mxu0 0.0
    %v747 = vand.u32 %v672, 4294901760
    %v748 = vsub.f32 %v672, %v747
    %v749 = vand.u32 %v748, 4294901760
    %v750 = vsub.f32 %v748, %v749
    %v751 = vand.u32 %v750, 4294901760
    %752 = vmatmul.mubr.f32.gmra.mrb[0].mxu0 %v751
    %v753 = vpop.f32.mrb[0].mxu0
    %v754 = vadd.f32 %v665, %v753
    %v755 = vpop.f32.mrb[0].mxu0
    %756 = vmatprep.mubr.f32.mxu0 0.0
    %v757 = vand.u32 %v674, 4294901760
    %v758 = vsub.f32 %v674, %v757
    %v759 = vand.u32 %v758, 4294901760
    %v760 = vsub.f32 %v758, %v759
    %v761 = vand.u32 %v760, 4294901760
    %762 = vmatmul.mubr.f32.gmra.mrb[0].mxu0 %v761
    %v763 = vpop.f32.mrb[0].mxu0
    %v764 = vadd.f32 %v670, %v763
    %v765 = vpop.f32.mrb[0].mxu0
    %766 = vdwg.mxu0
    %767 = vmatprep.subr.mxu0 0.0
    %v768 = vand.u32 %v646, 4294901760
    %v769 = vsub.f32 %v646, %v768
    %v770 = vand.u32 %v769, 4294901760
    %v771 = vsub.f32 %v769, %v770
    %v772 = vand.u32 %v771, 4294901760
    %773 = vmatpush1.msra.mxu0 %v772
    %774 = vmatprep.subr.mxu0 0.0
    %v775 = vand.u32 %v647, 4294901760
    %v776 = vsub.f32 %v647, %v775
    %v777 = vand.u32 %v776, 4294901760
    %v778 = vsub.f32 %v776, %v777
    %v779 = vand.u32 %v778, 4294901760
    %780 = vmatpush1.msra.mxu0 %v779
    %781 = vmatprep.subr.mxu0 0.0
    %v782 = vand.u32 %v651, 4294901760
    %v783 = vsub.f32 %v651, %v782
    %v784 = vand.u32 %v783, 4294901760
    %v785 = vsub.f32 %v783, %v784
    %v786 = vand.u32 %v785, 4294901760
    %787 = vmatpush1.msra.mxu0 %v786
    %788 = vmatprep.subr.mxu0 0.0
    %v789 = vand.u32 %v653, 4294901760
    %v790 = vsub.f32 %v653, %v789
    %v791 = vand.u32 %v790, 4294901760
    %v792 = vsub.f32 %v790, %v791
    %v793 = vand.u32 %v792, 4294901760
    %794 = vmatpush1.msra.mxu0 %v793
    %795 = vmatprep.subr.mxu0 0.0
    %v796 = vand.u32 %v657, 4294901760
    %v797 = vsub.f32 %v657, %v796
    %v798 = vand.u32 %v797, 4294901760
    %v799 = vsub.f32 %v797, %v798
    %v800 = vand.u32 %v799, 4294901760
    %801 = vmatpush1.msra.mxu0 %v800
    %802 = vmatprep.subr.mxu0 0.0
    %v803 = vand.u32 %v659, 4294901760
    %v804 = vsub.f32 %v659, %v803
    %v805 = vand.u32 %v804, 4294901760
    %v806 = vsub.f32 %v804, %v805
    %v807 = vand.u32 %v806, 4294901760
    %808 = vmatpush1.msra.mxu0 %v807
    %809 = vmatprep.subr.mxu0 0.0
    %810 = vmatpush1.msra.mxu0 0.0
    %811 = vmatprep.subr.mxu0 0.0
    %812 = vmatpush1.msra.mxu0 0.0
    %813 = vmatprep.subr.mxu0 0.0
    %814 = vmatpush1.msra.mxu0 0.0
    %815 = vmatprep.subr.mxu0 0.0
    %816 = vmatpush1.msra.mxu0 0.0
    %817 = vmatprep.subr.mxu0 0.0
    %818 = vmatpush1.msra.mxu0 0.0
    %819 = vmatprep.subr.mxu0 0.0
    %820 = vmatpush1.msra.mxu0 0.0
    %821 = vmatprep.subr.mxu0 0.0
    %822 = vmatpush1.msra.mxu0 0.0
    %823 = vmatprep.subr.mxu0 0.0
    %824 = vmatpush1.msra.mxu0 0.0
    %825 = vmatprep.subr.mxu0 0.0
    %826 = vmatpush1.msra.mxu0 0.0
    %827 = vmatprep.subr.mxu0 0.0
    %828 = vmatpush1.msra.mxu0 0.0
    %829 = vmatprep.subr.mxu0 0.0
    %830 = vmatpush1.msra.mxu0 0.0
    %831 = vmatprep.subr.mxu0 0.0
    %832 = vmatpush1.msra.mxu0 0.0
    %833 = vmatprep.subr.mxu0 0.0
    %834 = vmatpush1.msra.mxu0 0.0
    %835 = vmatprep.subr.mxu0 0.0
    %836 = vmatpush1.msra.mxu0 0.0
    %837 = vmatprep.subr.mxu0 0.0
    %838 = vmatpush1.msra.mxu0 0.0
    %839 = vmatprep.subr.mxu0 0.0
    %840 = vmatpush1.msra.mxu0 0.0
    %841 = vmatprep.subr.mxu0 0.0
    %842 = vmatpush1.msra.mxu0 0.0
    %843 = vmatprep.subr.mxu0 0.0
    %844 = vmatpush1.msra.mxu0 0.0
    %845 = vmatprep.subr.mxu0 0.0
    %846 = vmatpush1.msra.mxu0 0.0
    %847 = vmatprep.subr.mxu0 0.0
    %848 = vmatpush1.msra.mxu0 0.0
    %849 = vmatprep.subr.mxu0 0.0
    %850 = vmatpush1.msra.mxu0 0.0
    %851 = vmatprep.subr.mxu0 0.0
    %852 = vmatpush1.msra.mxu0 0.0
    %853 = vmatprep.subr.mxu0 0.0
    %854 = vmatpush1.msra.mxu0 0.0
    %855 = vmatprep.subr.mxu0 0.0
    %856 = vmatpush1.msra.mxu0 0.0
    %857 = vmatprep.subr.mxu0 0.0
    %858 = vmatpush1.msra.mxu0 0.0
    %859 = vmatprep.subr.mxu0 0.0
    %860 = vmatpush1.msra.mxu0 0.0
    %861 = vmatprep.mubr.f32.mxu0 0.0
    %v862 = vand.u32 %v672, 4294901760
    %863 = vmatmul.mubr.f32.gmra.mrb[0].mxu0 %v862
    %v864 = vpop.f32.mrb[0].mxu0
    %v865 = vadd.f32 %v754, %v864
    %v866 = vpop.f32.mrb[0].mxu0
    %867 = vmatprep.mubr.f32.mxu0 0.0
    %v868 = vand.u32 %v674, 4294901760
    %869 = vmatmul.mubr.f32.gmra.mrb[0].mxu0 %v868
    %v870 = vpop.f32.mrb[0].mxu0
    %v871 = vadd.f32 %v764, %v870
    %v872 = vpop.f32.mrb[0].mxu0
    %873 = vdwg.mxu0
    %874 = vmatprep.subr.mxu0 0.0
    %v875 = vand.u32 %v646, 4294901760
    %v876 = vsub.f32 %v646, %v875
    %877 = vmatpush1.msra.mxu0 %v876
    %878 = vmatprep.subr.mxu0 0.0
    %v879 = vand.u32 %v647, 4294901760
    %v880 = vsub.f32 %v647, %v879
    %881 = vmatpush1.msra.mxu0 %v880
    %882 = vmatprep.subr.mxu0 0.0
    %v883 = vand.u32 %v651, 4294901760
    %v884 = vsub.f32 %v651, %v883
    %885 = vmatpush1.msra.mxu0 %v884
    %886 = vmatprep.subr.mxu0 0.0
    %v887 = vand.u32 %v653, 4294901760
    %v888 = vsub.f32 %v653, %v887
    %889 = vmatpush1.msra.mxu0 %v888
    %890 = vmatprep.subr.mxu0 0.0
    %v891 = vand.u32 %v657, 4294901760
    %v892 = vsub.f32 %v657, %v891
    %893 = vmatpush1.msra.mxu0 %v892
    %894 = vmatprep.subr.mxu0 0.0
    %v895 = vand.u32 %v659, 4294901760
    %v896 = vsub.f32 %v659, %v895
    %897 = vmatpush1.msra.mxu0 %v896
    %898 = vmatprep.subr.mxu0 0.0
    %899 = vmatpush1.msra.mxu0 0.0
    %900 = vmatprep.subr.mxu0 0.0
    %901 = vmatpush1.msra.mxu0 0.0
    %902 = vmatprep.subr.mxu0 0.0
    %903 = vmatpush1.msra.mxu0 0.0
    %904 = vmatprep.subr.mxu0 0.0
    %905 = vmatpush1.msra.mxu0 0.0
    %906 = vmatprep.subr.mxu0 0.0
    %907 = vmatpush1.msra.mxu0 0.0
    %908 = vmatprep.subr.mxu0 0.0
    %909 = vmatpush1.msra.mxu0 0.0
    %910 = vmatprep.subr.mxu0 0.0
    %911 = vmatpush1.msra.mxu0 0.0
    %912 = vmatprep.subr.mxu0 0.0
    %913 = vmatpush1.msra.mxu0 0.0
    %914 = vmatprep.subr.mxu0 0.0
    %915 = vmatpush1.msra.mxu0 0.0
    %916 = vmatprep.subr.mxu0 0.0
    %917 = vmatpush1.msra.mxu0 0.0
    %918 = vmatprep.subr.mxu0 0.0
    %919 = vmatpush1.msra.mxu0 0.0
    %920 = vmatprep.subr.mxu0 0.0
    %921 = vmatpush1.msra.mxu0 0.0
    %922 = vmatprep.subr.mxu0 0.0
    %923 = vmatpush1.msra.mxu0 0.0
    %924 = vmatprep.subr.mxu0 0.0
    %925 = vmatpush1.msra.mxu0 0.0
    %926 = vmatprep.subr.mxu0 0.0
    %927 = vmatpush1.msra.mxu0 0.0
    %928 = vmatprep.subr.mxu0 0.0
    %929 = vmatpush1.msra.mxu0 0.0
    %930 = vmatprep.subr.mxu0 0.0
    %931 = vmatpush1.msra.mxu0 0.0
    %932 = vmatprep.subr.mxu0 0.0
    %933 = vmatpush1.msra.mxu0 0.0
    %934 = vmatprep.subr.mxu0 0.0
    %935 = vmatpush1.msra.mxu0 0.0
    %936 = vmatprep.subr.mxu0 0.0
    %937 = vmatpush1.msra.mxu0 0.0
    %938 = vmatprep.subr.mxu0 0.0
    %939 = vmatpush1.msra.mxu0 0.0
    %940 = vmatprep.subr.mxu0 0.0
    %941 = vmatpush1.msra.mxu0 0.0
    %942 = vmatprep.subr.mxu0 0.0
    %943 = vmatpush1.msra.mxu0 0.0
    %944 = vmatprep.subr.mxu0 0.0
    %945 = vmatpush1.msra.mxu0 0.0
    %946 = vmatprep.subr.mxu0 0.0
    %947 = vmatpush1.msra.mxu0 0.0
    %948 = vmatprep.subr.mxu0 0.0
    %949 = vmatpush1.msra.mxu0 0.0
    %950 = vmatprep.mubr.f32.mxu0 0.0
    %v951 = vand.u32 %v672, 4294901760
    %v952 = vsub.f32 %v672, %v951
    %953 = vmatmul.mubr.f32.gmra.mrb[0].mxu0 %v952
    %v954 = vpop.f32.mrb[0].mxu0
    %v955 = vadd.f32 %v865, %v954
    %v956 = vpop.f32.mrb[0].mxu0
    %957 = vmatprep.mubr.f32.mxu0 0.0
    %v958 = vand.u32 %v674, 4294901760
    %v959 = vsub.f32 %v674, %v958
    %960 = vmatmul.mubr.f32.gmra.mrb[0].mxu0 %v959
    %v961 = vpop.f32.mrb[0].mxu0
    %v962 = vadd.f32 %v871, %v961
    %v963 = vpop.f32.mrb[0].mxu0
    %964 = vdwg.mxu0
    %965 = vmatprep.subr.mxu0 0.0
    %v966 = vand.u32 %v646, 4294901760
    %967 = vmatpush1.msra.mxu0 %v966
    %968 = vmatprep.subr.mxu0 0.0
    %v969 = vand.u32 %v647, 4294901760
    %970 = vmatpush1.msra.mxu0 %v969
    %971 = vmatprep.subr.mxu0 0.0
    %v972 = vand.u32 %v651, 4294901760
    %973 = vmatpush1.msra.mxu0 %v972
    %974 = vmatprep.subr.mxu0 0.0
    %v975 = vand.u32 %v653, 4294901760
    %976 = vmatpush1.msra.mxu0 %v975
    %977 = vmatprep.subr.mxu0 0.0
    %v978 = vand.u32 %v657, 4294901760
    %979 = vmatpush1.msra.mxu0 %v978
    %980 = vmatprep.subr.mxu0 0.0
    %v981 = vand.u32 %v659, 4294901760
    %982 = vmatpush1.msra.mxu0 %v981
    %983 = vmatprep.subr.mxu0 0.0
    %984 = vmatpush1.msra.mxu0 0.0
    %985 = vmatprep.subr.mxu0 0.0
    %986 = vmatpush1.msra.mxu0 0.0
    %987 = vmatprep.subr.mxu0 0.0
    %988 = vmatpush1.msra.mxu0 0.0
    %989 = vmatprep.subr.mxu0 0.0
    %990 = vmatpush1.msra.mxu0 0.0
    %991 = vmatprep.subr.mxu0 0.0
    %992 = vmatpush1.msra.mxu0 0.0
    %993 = vmatprep.subr.mxu0 0.0
    %994 = vmatpush1.msra.mxu0 0.0
    %995 = vmatprep.subr.mxu0 0.0
    %996 = vmatpush1.msra.mxu0 0.0
    %997 = vmatprep.subr.mxu0 0.0
    %998 = vmatpush1.msra.mxu0 0.0
    %999 = vmatprep.subr.mxu0 0.0
    %1000 = vmatpush1.msra.mxu0 0.0
    %1001 = vmatprep.subr.mxu0 0.0
    %1002 = vmatpush1.msra.mxu0 0.0
    %1003 = vmatprep.subr.mxu0 0.0
    %1004 = vmatpush1.msra.mxu0 0.0
    %1005 = vmatprep.subr.mxu0 0.0
    %1006 = vmatpush1.msra.mxu0 0.0
    %1007 = vmatprep.subr.mxu0 0.0
    %1008 = vmatpush1.msra.mxu0 0.0
    %1009 = vmatprep.subr.mxu0 0.0
    %1010 = vmatpush1.msra.mxu0 0.0
    %1011 = vmatprep.subr.mxu0 0.0
    %1012 = vmatpush1.msra.mxu0 0.0
    %1013 = vmatprep.subr.mxu0 0.0
    %1014 = vmatpush1.msra.mxu0 0.0
    %1015 = vmatprep.subr.mxu0 0.0
    %1016 = vmatpush1.msra.mxu0 0.0
    %1017 = vmatprep.subr.mxu0 0.0
    %1018 = vmatpush1.msra.mxu0 0.0
    %1019 = vmatprep.subr.mxu0 0.0
    %1020 = vmatpush1.msra.mxu0 0.0
    %1021 = vmatprep.subr.mxu0 0.0
    %1022 = vmatpush1.msra.mxu0 0.0
    %1023 = vmatprep.subr.mxu0 0.0
    %1024 = vmatpush1.msra.mxu0 0.0
    %1025 = vmatprep.subr.mxu0 0.0
    %1026 = vmatpush1.msra.mxu0 0.0
    %1027 = vmatprep.subr.mxu0 0.0
    %1028 = vmatpush1.msra.mxu0 0.0
    %1029 = vmatprep.subr.mxu0 0.0
    %1030 = vmatpush1.msra.mxu0 0.0
    %1031 = vmatprep.subr.mxu0 0.0
    %1032 = vmatpush1.msra.mxu0 0.0
    %1033 = vmatprep.subr.mxu0 0.0
    %1034 = vmatpush1.msra.mxu0 0.0
    %1035 = vmatprep.mubr.f32.mxu0 0.0
    %v1036 = vand.u32 %v672, 4294901760
    %v1037 = vsub.f32 %v672, %v1036
    %v1038 = vand.u32 %v1037, 4294901760
    %1039 = vmatmul.mubr.f32.gmra.mrb[0].mxu0 %v1038
    %v1040 = vpop.f32.mrb[0].mxu0
    %v1041 = vadd.f32 %v955, %v1040
    %v1042 = vpop.f32.mrb[0].mxu0
    %1043 = vmatprep.mubr.f32.mxu0 0.0
    %v1044 = vand.u32 %v674, 4294901760
    %v1045 = vsub.f32 %v674, %v1044
    %v1046 = vand.u32 %v1045, 4294901760
    %1047 = vmatmul.mubr.f32.gmra.mrb[0].mxu0 %v1046
    %v1048 = vpop.f32.mrb[0].mxu0
    %v1049 = vadd.f32 %v962, %v1048
    %v1050 = vpop.f32.mrb[0].mxu0
    %1051 = vdwg.mxu0
    %1052 = vmatprep.subr.mxu0 0.0
    %v1053 = vand.u32 %v646, 4294901760
    %v1054 = vsub.f32 %v646, %v1053
    %v1055 = vand.u32 %v1054, 4294901760
    %1056 = vmatpush1.msra.mxu0 %v1055
    %1057 = vmatprep.subr.mxu0 0.0
    %v1058 = vand.u32 %v647, 4294901760
    %v1059 = vsub.f32 %v647, %v1058
    %v1060 = vand.u32 %v1059, 4294901760
    %1061 = vmatpush1.msra.mxu0 %v1060
    %1062 = vmatprep.subr.mxu0 0.0
    %v1063 = vand.u32 %v651, 4294901760
    %v1064 = vsub.f32 %v651, %v1063
    %v1065 = vand.u32 %v1064, 4294901760
    %1066 = vmatpush1.msra.mxu0 %v1065
    %1067 = vmatprep.subr.mxu0 0.0
    %v1068 = vand.u32 %v653, 4294901760
    %v1069 = vsub.f32 %v653, %v1068
    %v1070 = vand.u32 %v1069, 4294901760
    %1071 = vmatpush1.msra.mxu0 %v1070
    %1072 = vmatprep.subr.mxu0 0.0
    %v1073 = vand.u32 %v657, 4294901760
    %v1074 = vsub.f32 %v657, %v1073
    %v1075 = vand.u32 %v1074, 4294901760
    %1076 = vmatpush1.msra.mxu0 %v1075
    %1077 = vmatprep.subr.mxu0 0.0
    %v1078 = vand.u32 %v659, 4294901760
    %v1079 = vsub.f32 %v659, %v1078
    %v1080 = vand.u32 %v1079, 4294901760
    %1081 = vmatpush1.msra.mxu0 %v1080
    %1082 = vmatprep.subr.mxu0 0.0
    %1083 = vmatpush1.msra.mxu0 0.0
    %1084 = vmatprep.subr.mxu0 0.0
    %1085 = vmatpush1.msra.mxu0 0.0
    %1086 = vmatprep.subr.mxu0 0.0
    %1087 = vmatpush1.msra.mxu0 0.0
    %1088 = vmatprep.subr.mxu0 0.0
    %1089 = vmatpush1.msra.mxu0 0.0
    %1090 = vmatprep.subr.mxu0 0.0
    %1091 = vmatpush1.msra.mxu0 0.0
    %1092 = vmatprep.subr.mxu0 0.0
    %1093 = vmatpush1.msra.mxu0 0.0
    %1094 = vmatprep.subr.mxu0 0.0
    %1095 = vmatpush1.msra.mxu0 0.0
    %1096 = vmatprep.subr.mxu0 0.0
    %1097 = vmatpush1.msra.mxu0 0.0
    %1098 = vmatprep.subr.mxu0 0.0
    %1099 = vmatpush1.msra.mxu0 0.0
    %1100 = vmatprep.subr.mxu0 0.0
    %1101 = vmatpush1.msra.mxu0 0.0
    %1102 = vmatprep.subr.mxu0 0.0
    %1103 = vmatpush1.msra.mxu0 0.0
    %1104 = vmatprep.subr.mxu0 0.0
    %1105 = vmatpush1.msra.mxu0 0.0
    %1106 = vmatprep.subr.mxu0 0.0
    %1107 = vmatpush1.msra.mxu0 0.0
    %1108 = vmatprep.subr.mxu0 0.0
    %1109 = vmatpush1.msra.mxu0 0.0
    %1110 = vmatprep.subr.mxu0 0.0
    %1111 = vmatpush1.msra.mxu0 0.0
    %1112 = vmatprep.subr.mxu0 0.0
    %1113 = vmatpush1.msra.mxu0 0.0
    %1114 = vmatprep.subr.mxu0 0.0
    %1115 = vmatpush1.msra.mxu0 0.0
    %1116 = vmatprep.subr.mxu0 0.0
    %1117 = vmatpush1.msra.mxu0 0.0
    %1118 = vmatprep.subr.mxu0 0.0
    %1119 = vmatpush1.msra.mxu0 0.0
    %1120 = vmatprep.subr.mxu0 0.0
    %1121 = vmatpush1.msra.mxu0 0.0
    %1122 = vmatprep.subr.mxu0 0.0
    %1123 = vmatpush1.msra.mxu0 0.0
    %1124 = vmatprep.subr.mxu0 0.0
    %1125 = vmatpush1.msra.mxu0 0.0
    %1126 = vmatprep.subr.mxu0 0.0
    %1127 = vmatpush1.msra.mxu0 0.0
    %1128 = vmatprep.subr.mxu0 0.0
    %1129 = vmatpush1.msra.mxu0 0.0
    %1130 = vmatprep.subr.mxu0 0.0
    %1131 = vmatpush1.msra.mxu0 0.0
    %1132 = vmatprep.subr.mxu0 0.0
    %1133 = vmatpush1.msra.mxu0 0.0
    %1134 = vmatprep.mubr.f32.mxu0 0.0
    %v1135 = vand.u32 %v672, 4294901760
    %1136 = vmatmul.mubr.f32.gmra.mrb[0].mxu0 %v1135
    %v1137 = vpop.f32.mrb[0].mxu0
    %v1138 = vadd.f32 %v1041, %v1137
    %v1139 = vpop.f32.mrb[0].mxu0
    %1140 = vmatprep.mubr.f32.mxu0 0.0
    %v1141 = vand.u32 %v674, 4294901760
    %1142 = vmatmul.mubr.f32.gmra.mrb[0].mxu0 %v1141
    %v1143 = vpop.f32.mrb[0].mxu0
    %v1144 = vadd.f32 %v1049, %v1143
    %v1145 = vpop.f32.mrb[0].mxu0
    %1146 = vdwg.mxu0
    %1147 = vmatprep.subr.mxu0 0.0
    %v1148 = vand.u32 %v646, 4294901760
    %1149 = vmatpush1.msra.mxu0 %v1148
    %1150 = vmatprep.subr.mxu0 0.0
    %v1151 = vand.u32 %v647, 4294901760
    %1152 = vmatpush1.msra.mxu0 %v1151
    %1153 = vmatprep.subr.mxu0 0.0
    %v1154 = vand.u32 %v651, 4294901760
    %1155 = vmatpush1.msra.mxu0 %v1154
    %1156 = vmatprep.subr.mxu0 0.0
    %v1157 = vand.u32 %v653, 4294901760
    %1158 = vmatpush1.msra.mxu0 %v1157
    %1159 = vmatprep.subr.mxu0 0.0
    %v1160 = vand.u32 %v657, 4294901760
    %1161 = vmatpush1.msra.mxu0 %v1160
    %1162 = vmatprep.subr.mxu0 0.0
    %v1163 = vand.u32 %v659, 4294901760
    %1164 = vmatpush1.msra.mxu0 %v1163
    %1165 = vmatprep.subr.mxu0 0.0
    %1166 = vmatpush1.msra.mxu0 0.0
    %1167 = vmatprep.subr.mxu0 0.0
    %1168 = vmatpush1.msra.mxu0 0.0
    %1169 = vmatprep.subr.mxu0 0.0
    %1170 = vmatpush1.msra.mxu0 0.0
    %1171 = vmatprep.subr.mxu0 0.0
    %1172 = vmatpush1.msra.mxu0 0.0
    %1173 = vmatprep.subr.mxu0 0.0
    %1174 = vmatpush1.msra.mxu0 0.0
    %1175 = vmatprep.subr.mxu0 0.0
    %1176 = vmatpush1.msra.mxu0 0.0
    %1177 = vmatprep.subr.mxu0 0.0
    %1178 = vmatpush1.msra.mxu0 0.0
    %1179 = vmatprep.subr.mxu0 0.0
    %1180 = vmatpush1.msra.mxu0 0.0
    %1181 = vmatprep.subr.mxu0 0.0
    %1182 = vmatpush1.msra.mxu0 0.0
    %1183 = vmatprep.subr.mxu0 0.0
    %1184 = vmatpush1.msra.mxu0 0.0
    %1185 = vmatprep.subr.mxu0 0.0
    %1186 = vmatpush1.msra.mxu0 0.0
    %1187 = vmatprep.subr.mxu0 0.0
    %1188 = vmatpush1.msra.mxu0 0.0
    %1189 = vmatprep.subr.mxu0 0.0
    %1190 = vmatpush1.msra.mxu0 0.0
    %1191 = vmatprep.subr.mxu0 0.0
    %1192 = vmatpush1.msra.mxu0 0.0
    %1193 = vmatprep.subr.mxu0 0.0
    %1194 = vmatpush1.msra.mxu0 0.0
    %1195 = vmatprep.subr.mxu0 0.0
    %1196 = vmatpush1.msra.mxu0 0.0
    %1197 = vmatprep.subr.mxu0 0.0
    %1198 = vmatpush1.msra.mxu0 0.0
    %1199 = vmatprep.subr.mxu0 0.0
    %1200 = vmatpush1.msra.mxu0 0.0
    %1201 = vmatprep.subr.mxu0 0.0
    %1202 = vmatpush1.msra.mxu0 0.0
    %1203 = vmatprep.subr.mxu0 0.0
    %1204 = vmatpush1.msra.mxu0 0.0
    %1205 = vmatprep.subr.mxu0 0.0
    %1206 = vmatpush1.msra.mxu0 0.0
    %1207 = vmatprep.subr.mxu0 0.0
    %1208 = vmatpush1.msra.mxu0 0.0
    %1209 = vmatprep.subr.mxu0 0.0
    %1210 = vmatpush1.msra.mxu0 0.0
    %1211 = vmatprep.subr.mxu0 0.0
    %1212 = vmatpush1.msra.mxu0 0.0
    %1213 = vmatprep.subr.mxu0 0.0
    %1214 = vmatpush1.msra.mxu0 0.0
    %1215 = vmatprep.subr.mxu0 0.0
    %1216 = vmatpush1.msra.mxu0 0.0
    %1217 = vmatprep.mubr.f32.mxu0 0.0
    %v1218 = vand.u32 %v672, 4294901760
    %1219 = vmatmul.mubr.f32.gmra.mrb[0].mxu0 %v1218
    %v1220 = vpop.f32.mrb[0].mxu0
    %v1221 = vadd.f32 %v1138, %v1220
    %v1222 = vpop.f32.mrb[0].mxu0
    %1223 = vmatprep.mubr.f32.mxu0 0.0
    %v1224 = vand.u32 %v674, 4294901760
    %1225 = vmatmul.mubr.f32.gmra.mrb[0].mxu0 %v1224
    %v1226 = vpop.f32.mrb[0].mxu0
    %v1227 = vadd.f32 %v1144, %v1226
    %v1228 = vpop.f32.mrb[0].mxu0
    %1229 = vdwg.mxu0
    %v1230 = vmax.f32 %v1221, 0.0
    %v1231 = vmax.f32 %v1227, 0.0
    %1234 = vrot.lane.b32.xlu0 %v1230, 2
    %v1235 = vpop.permute.xlu0 %1234
    %1236 = vrot.lane.b32.xlu0 %v1231, 2
    %v1237 = vpop.permute.xlu0 %1236
    %v1240 = vsel %vm44, 0.0, %v1235
    %v1241 = vsel %vm44, 0.0, %v1237
    %vm1242 = vcmask 56320
    %v1243 = vsel %vm1242, %v1240, 0.0
    %v1244 = vsel %vm1242, %v1241, 0.0
    %1247 = vrot.lane.b32.xlu0 %v1243, 127
    %v1248 = vpop.permute.xlu0 %1247
    %1249 = vrot.lane.b32.xlu0 %v1244, 127
    %v1250 = vpop.permute.xlu0 %1249
    %1253 = vrot.lane.b32.xlu0 %v1243, 126
    %v1254 = vpop.permute.xlu0 %1253
    %1255 = vrot.lane.b32.xlu0 %v1244, 126
    %v1256 = vpop.permute.xlu0 %1255
    %1260 = vset.pattern.permute.xlu0 48
    %1261 = vperm.xlu0 %1260, %v29
    %v1262 = vpop.permute.xlu0 %1261
    %1265 = vset.pattern.permute.xlu0 48
    %1266 = vperm.xlu0 %1265, %v30
    %v1267 = vpop.permute.xlu0 %1266
    %v1269 = vsel %vm74, %v29, 0
    %v1271 = vsel %vm74, %v30, 0
    %1273 = vmatprep.subr.mxu0 0.0
    %v1274 = vand.u32 %v1243, 4294901760
    %1275 = vmatpush1.msra.mxu0 %v1274
    %1276 = vmatprep.subr.mxu0 0.0
    %v1277 = vand.u32 %v1244, 4294901760
    %1278 = vmatpush1.msra.mxu0 %v1277
    %1279 = vmatprep.subr.mxu0 0.0
    %v1280 = vand.u32 %v1248, 4294901760
    %1281 = vmatpush1.msra.mxu0 %v1280
    %1282 = vmatprep.subr.mxu0 0.0
    %v1283 = vand.u32 %v1250, 4294901760
    %1284 = vmatpush1.msra.mxu0 %v1283
    %1285 = vmatprep.subr.mxu0 0.0
    %v1286 = vand.u32 %v1254, 4294901760
    %1287 = vmatpush1.msra.mxu0 %v1286
    %1288 = vmatprep.subr.mxu0 0.0
    %v1289 = vand.u32 %v1256, 4294901760
    %1290 = vmatpush1.msra.mxu0 %v1289
    %1291 = vmatprep.subr.mxu0 0.0
    %1292 = vmatpush1.msra.mxu0 0.0
    %1293 = vmatprep.subr.mxu0 0.0
    %1294 = vmatpush1.msra.mxu0 0.0
    %1295 = vmatprep.subr.mxu0 0.0
    %1296 = vmatpush1.msra.mxu0 0.0
    %1297 = vmatprep.subr.mxu0 0.0
    %1298 = vmatpush1.msra.mxu0 0.0
    %1299 = vmatprep.subr.mxu0 0.0
    %1300 = vmatpush1.msra.mxu0 0.0
    %1301 = vmatprep.subr.mxu0 0.0
    %1302 = vmatpush1.msra.mxu0 0.0
    %1303 = vmatprep.subr.mxu0 0.0
    %1304 = vmatpush1.msra.mxu0 0.0
    %1305 = vmatprep.subr.mxu0 0.0
    %1306 = vmatpush1.msra.mxu0 0.0
    %1307 = vmatprep.subr.mxu0 0.0
    %1308 = vmatpush1.msra.mxu0 0.0
    %1309 = vmatprep.subr.mxu0 0.0
    %1310 = vmatpush1.msra.mxu0 0.0
    %1311 = vmatprep.subr.mxu0 0.0
    %1312 = vmatpush1.msra.mxu0 0.0
    %1313 = vmatprep.subr.mxu0 0.0
    %1314 = vmatpush1.msra.mxu0 0.0
    %1315 = vmatprep.subr.mxu0 0.0
    %1316 = vmatpush1.msra.mxu0 0.0
    %1317 = vmatprep.subr.mxu0 0.0
    %1318 = vmatpush1.msra.mxu0 0.0
    %1319 = vmatprep.subr.mxu0 0.0
    %1320 = vmatpush1.msra.mxu0 0.0
    %1321 = vmatprep.subr.mxu0 0.0
    %1322 = vmatpush1.msra.mxu0 0.0
    %1323 = vmatprep.subr.mxu0 0.0
    %1324 = vmatpush1.msra.mxu0 0.0
    %1325 = vmatprep.subr.mxu0 0.0
    %1326 = vmatpush1.msra.mxu0 0.0
    %1327 = vmatprep.subr.mxu0 0.0
    %1328 = vmatpush1.msra.mxu0 0.0
    %1329 = vmatprep.subr.mxu0 0.0
    %1330 = vmatpush1.msra.mxu0 0.0
    %1331 = vmatprep.subr.mxu0 0.0
    %1332 = vmatpush1.msra.mxu0 0.0
    %1333 = vmatprep.subr.mxu0 0.0
    %1334 = vmatpush1.msra.mxu0 0.0
    %1335 = vmatprep.subr.mxu0 0.0
    %1336 = vmatpush1.msra.mxu0 0.0
    %1337 = vmatprep.subr.mxu0 0.0
    %1338 = vmatpush1.msra.mxu0 0.0
    %1339 = vmatprep.subr.mxu0 0.0
    %1340 = vmatpush1.msra.mxu0 0.0
    %1341 = vmatprep.subr.mxu0 0.0
    %1342 = vmatpush1.msra.mxu0 0.0
    %1343 = vmatprep.mubr.f32.mxu0 0.0
    %v1344 = vand.u32 %v1269, 4294901760
    %v1345 = vsub.f32 %v1269, %v1344
    %v1346 = vand.u32 %v1345, 4294901760
    %v1347 = vsub.f32 %v1345, %v1346
    %v1348 = vand.u32 %v1347, 4294901760
    %1349 = vmatmul.mubr.f32.gmra.mrb[0].mxu0 %v1348
    %v1350 = vpop.f32.mrb[0].mxu0
    %v1351 = vadd.f32 %v1262, %v1350
    %v1352 = vpop.f32.mrb[0].mxu0
    %1353 = vmatprep.mubr.f32.mxu0 0.0
    %v1354 = vand.u32 %v1271, 4294901760
    %v1355 = vsub.f32 %v1271, %v1354
    %v1356 = vand.u32 %v1355, 4294901760
    %v1357 = vsub.f32 %v1355, %v1356
    %v1358 = vand.u32 %v1357, 4294901760
    %1359 = vmatmul.mubr.f32.gmra.mrb[0].mxu0 %v1358
    %v1360 = vpop.f32.mrb[0].mxu0
    %v1361 = vadd.f32 %v1267, %v1360
    %v1362 = vpop.f32.mrb[0].mxu0
    %1363 = vdwg.mxu0
    %1364 = vmatprep.subr.mxu0 0.0
    %v1365 = vand.u32 %v1243, 4294901760
    %v1366 = vsub.f32 %v1243, %v1365
    %v1367 = vand.u32 %v1366, 4294901760
    %v1368 = vsub.f32 %v1366, %v1367
    %v1369 = vand.u32 %v1368, 4294901760
    %1370 = vmatpush1.msra.mxu0 %v1369
    %1371 = vmatprep.subr.mxu0 0.0
    %v1372 = vand.u32 %v1244, 4294901760
    %v1373 = vsub.f32 %v1244, %v1372
    %v1374 = vand.u32 %v1373, 4294901760
    %v1375 = vsub.f32 %v1373, %v1374
    %v1376 = vand.u32 %v1375, 4294901760
    %1377 = vmatpush1.msra.mxu0 %v1376
    %1378 = vmatprep.subr.mxu0 0.0
    %v1379 = vand.u32 %v1248, 4294901760
    %v1380 = vsub.f32 %v1248, %v1379
    %v1381 = vand.u32 %v1380, 4294901760
    %v1382 = vsub.f32 %v1380, %v1381
    %v1383 = vand.u32 %v1382, 4294901760
    %1384 = vmatpush1.msra.mxu0 %v1383
    %1385 = vmatprep.subr.mxu0 0.0
    %v1386 = vand.u32 %v1250, 4294901760
    %v1387 = vsub.f32 %v1250, %v1386
    %v1388 = vand.u32 %v1387, 4294901760
    %v1389 = vsub.f32 %v1387, %v1388
    %v1390 = vand.u32 %v1389, 4294901760
    %1391 = vmatpush1.msra.mxu0 %v1390
    %1392 = vmatprep.subr.mxu0 0.0
    %v1393 = vand.u32 %v1254, 4294901760
    %v1394 = vsub.f32 %v1254, %v1393
    %v1395 = vand.u32 %v1394, 4294901760
    %v1396 = vsub.f32 %v1394, %v1395
    %v1397 = vand.u32 %v1396, 4294901760
    %1398 = vmatpush1.msra.mxu0 %v1397
    %1399 = vmatprep.subr.mxu0 0.0
    %v1400 = vand.u32 %v1256, 4294901760
    %v1401 = vsub.f32 %v1256, %v1400
    %v1402 = vand.u32 %v1401, 4294901760
    %v1403 = vsub.f32 %v1401, %v1402
    %v1404 = vand.u32 %v1403, 4294901760
    %1405 = vmatpush1.msra.mxu0 %v1404
    %1406 = vmatprep.subr.mxu0 0.0
    %1407 = vmatpush1.msra.mxu0 0.0
    %1408 = vmatprep.subr.mxu0 0.0
    %1409 = vmatpush1.msra.mxu0 0.0
    %1410 = vmatprep.subr.mxu0 0.0
    %1411 = vmatpush1.msra.mxu0 0.0
    %1412 = vmatprep.subr.mxu0 0.0
    %1413 = vmatpush1.msra.mxu0 0.0
    %1414 = vmatprep.subr.mxu0 0.0
    %1415 = vmatpush1.msra.mxu0 0.0
    %1416 = vmatprep.subr.mxu0 0.0
    %1417 = vmatpush1.msra.mxu0 0.0
    %1418 = vmatprep.subr.mxu0 0.0
    %1419 = vmatpush1.msra.mxu0 0.0
    %1420 = vmatprep.subr.mxu0 0.0
    %1421 = vmatpush1.msra.mxu0 0.0
    %1422 = vmatprep.subr.mxu0 0.0
    %1423 = vmatpush1.msra.mxu0 0.0
    %1424 = vmatprep.subr.mxu0 0.0
    %1425 = vmatpush1.msra.mxu0 0.0
    %1426 = vmatprep.subr.mxu0 0.0
    %1427 = vmatpush1.msra.mxu0 0.0
    %1428 = vmatprep.subr.mxu0 0.0
    %1429 = vmatpush1.msra.mxu0 0.0
    %1430 = vmatprep.subr.mxu0 0.0
    %1431 = vmatpush1.msra.mxu0 0.0
    %1432 = vmatprep.subr.mxu0 0.0
    %1433 = vmatpush1.msra.mxu0 0.0
    %1434 = vmatprep.subr.mxu0 0.0
    %1435 = vmatpush1.msra.mxu0 0.0
    %1436 = vmatprep.subr.mxu0 0.0
    %1437 = vmatpush1.msra.mxu0 0.0
    %1438 = vmatprep.subr.mxu0 0.0
    %1439 = vmatpush1.msra.mxu0 0.0
    %1440 = vmatprep.subr.mxu0 0.0
    %1441 = vmatpush1.msra.mxu0 0.0
    %1442 = vmatprep.subr.mxu0 0.0
    %1443 = vmatpush1.msra.mxu0 0.0
    %1444 = vmatprep.subr.mxu0 0.0
    %1445 = vmatpush1.msra.mxu0 0.0
    %1446 = vmatprep.subr.mxu0 0.0
    %1447 = vmatpush1.msra.mxu0 0.0
    %1448 = vmatprep.subr.mxu0 0.0
    %1449 = vmatpush1.msra.mxu0 0.0
    %1450 = vmatprep.subr.mxu0 0.0
    %1451 = vmatpush1.msra.mxu0 0.0
    %1452 = vmatprep.subr.mxu0 0.0
    %1453 = vmatpush1.msra.mxu0 0.0
    %1454 = vmatprep.subr.mxu0 0.0
    %1455 = vmatpush1.msra.mxu0 0.0
    %1456 = vmatprep.subr.mxu0 0.0
    %1457 = vmatpush1.msra.mxu0 0.0
    %1458 = vmatprep.mubr.f32.mxu0 0.0
    %v1459 = vand.u32 %v1269, 4294901760
    %1460 = vmatmul.mubr.f32.gmra.mrb[0].mxu0 %v1459
    %v1461 = vpop.f32.mrb[0].mxu0
    %v1462 = vadd.f32 %v1351, %v1461
    %v1463 = vpop.f32.mrb[0].mxu0
    %1464 = vmatprep.mubr.f32.mxu0 0.0
    %v1465 = vand.u32 %v1271, 4294901760
    %1466 = vmatmul.mubr.f32.gmra.mrb[0].mxu0 %v1465
    %v1467 = vpop.f32.mrb[0].mxu0
    %v1468 = vadd.f32 %v1361, %v1467
    %v1469 = vpop.f32.mrb[0].mxu0
    %1470 = vdwg.mxu0
    %1471 = vmatprep.subr.mxu0 0.0
    %v1472 = vand.u32 %v1243, 4294901760
    %v1473 = vsub.f32 %v1243, %v1472
    %1474 = vmatpush1.msra.mxu0 %v1473
    %1475 = vmatprep.subr.mxu0 0.0
    %v1476 = vand.u32 %v1244, 4294901760
    %v1477 = vsub.f32 %v1244, %v1476
    %1478 = vmatpush1.msra.mxu0 %v1477
    %1479 = vmatprep.subr.mxu0 0.0
    %v1480 = vand.u32 %v1248, 4294901760
    %v1481 = vsub.f32 %v1248, %v1480
    %1482 = vmatpush1.msra.mxu0 %v1481
    %1483 = vmatprep.subr.mxu0 0.0
    %v1484 = vand.u32 %v1250, 4294901760
    %v1485 = vsub.f32 %v1250, %v1484
    %1486 = vmatpush1.msra.mxu0 %v1485
    %1487 = vmatprep.subr.mxu0 0.0
    %v1488 = vand.u32 %v1254, 4294901760
    %v1489 = vsub.f32 %v1254, %v1488
    %1490 = vmatpush1.msra.mxu0 %v1489
    %1491 = vmatprep.subr.mxu0 0.0
    %v1492 = vand.u32 %v1256, 4294901760
    %v1493 = vsub.f32 %v1256, %v1492
    %1494 = vmatpush1.msra.mxu0 %v1493
    %1495 = vmatprep.subr.mxu0 0.0
    %1496 = vmatpush1.msra.mxu0 0.0
    %1497 = vmatprep.subr.mxu0 0.0
    %1498 = vmatpush1.msra.mxu0 0.0
    %1499 = vmatprep.subr.mxu0 0.0
    %1500 = vmatpush1.msra.mxu0 0.0
    %1501 = vmatprep.subr.mxu0 0.0
    %1502 = vmatpush1.msra.mxu0 0.0
    %1503 = vmatprep.subr.mxu0 0.0
    %1504 = vmatpush1.msra.mxu0 0.0
    %1505 = vmatprep.subr.mxu0 0.0
    %1506 = vmatpush1.msra.mxu0 0.0
    %1507 = vmatprep.subr.mxu0 0.0
    %1508 = vmatpush1.msra.mxu0 0.0
    %1509 = vmatprep.subr.mxu0 0.0
    %1510 = vmatpush1.msra.mxu0 0.0
    %1511 = vmatprep.subr.mxu0 0.0
    %1512 = vmatpush1.msra.mxu0 0.0
    %1513 = vmatprep.subr.mxu0 0.0
    %1514 = vmatpush1.msra.mxu0 0.0
    %1515 = vmatprep.subr.mxu0 0.0
    %1516 = vmatpush1.msra.mxu0 0.0
    %1517 = vmatprep.subr.mxu0 0.0
    %1518 = vmatpush1.msra.mxu0 0.0
    %1519 = vmatprep.subr.mxu0 0.0
    %1520 = vmatpush1.msra.mxu0 0.0
    %1521 = vmatprep.subr.mxu0 0.0
    %1522 = vmatpush1.msra.mxu0 0.0
    %1523 = vmatprep.subr.mxu0 0.0
    %1524 = vmatpush1.msra.mxu0 0.0
    %1525 = vmatprep.subr.mxu0 0.0
    %1526 = vmatpush1.msra.mxu0 0.0
    %1527 = vmatprep.subr.mxu0 0.0
    %1528 = vmatpush1.msra.mxu0 0.0
    %1529 = vmatprep.subr.mxu0 0.0
    %1530 = vmatpush1.msra.mxu0 0.0
    %1531 = vmatprep.subr.mxu0 0.0
    %1532 = vmatpush1.msra.mxu0 0.0
    %1533 = vmatprep.subr.mxu0 0.0
    %1534 = vmatpush1.msra.mxu0 0.0
    %1535 = vmatprep.subr.mxu0 0.0
    %1536 = vmatpush1.msra.mxu0 0.0
    %1537 = vmatprep.subr.mxu0 0.0
    %1538 = vmatpush1.msra.mxu0 0.0
    %1539 = vmatprep.subr.mxu0 0.0
    %1540 = vmatpush1.msra.mxu0 0.0
    %1541 = vmatprep.subr.mxu0 0.0
    %1542 = vmatpush1.msra.mxu0 0.0
    %1543 = vmatprep.subr.mxu0 0.0
    %1544 = vmatpush1.msra.mxu0 0.0
    %1545 = vmatprep.subr.mxu0 0.0
    %1546 = vmatpush1.msra.mxu0 0.0
    %1547 = vmatprep.mubr.f32.mxu0 0.0
    %v1548 = vand.u32 %v1269, 4294901760
    %v1549 = vsub.f32 %v1269, %v1548
    %1550 = vmatmul.mubr.f32.gmra.mrb[0].mxu0 %v1549
    %v1551 = vpop.f32.mrb[0].mxu0
    %v1552 = vadd.f32 %v1462, %v1551
    %v1553 = vpop.f32.mrb[0].mxu0
    %1554 = vmatprep.mubr.f32.mxu0 0.0
    %v1555 = vand.u32 %v1271, 4294901760
    %v1556 = vsub.f32 %v1271, %v1555
    %1557 = vmatmul.mubr.f32.gmra.mrb[0].mxu0 %v1556
    %v1558 = vpop.f32.mrb[0].mxu0
    %v1559 = vadd.f32 %v1468, %v1558
    %v1560 = vpop.f32.mrb[0].mxu0
    %1561 = vdwg.mxu0
    %1562 = vmatprep.subr.mxu0 0.0
    %v1563 = vand.u32 %v1243, 4294901760
    %1564 = vmatpush1.msra.mxu0 %v1563
    %1565 = vmatprep.subr.mxu0 0.0
    %v1566 = vand.u32 %v1244, 4294901760
    %1567 = vmatpush1.msra.mxu0 %v1566
    %1568 = vmatprep.subr.mxu0 0.0
    %v1569 = vand.u32 %v1248, 4294901760
    %1570 = vmatpush1.msra.mxu0 %v1569
    %1571 = vmatprep.subr.mxu0 0.0
    %v1572 = vand.u32 %v1250, 4294901760
    %1573 = vmatpush1.msra.mxu0 %v1572
    %1574 = vmatprep.subr.mxu0 0.0
    %v1575 = vand.u32 %v1254, 4294901760
    %1576 = vmatpush1.msra.mxu0 %v1575
    %1577 = vmatprep.subr.mxu0 0.0
    %v1578 = vand.u32 %v1256, 4294901760
    %1579 = vmatpush1.msra.mxu0 %v1578
    %1580 = vmatprep.subr.mxu0 0.0
    %1581 = vmatpush1.msra.mxu0 0.0
    %1582 = vmatprep.subr.mxu0 0.0
    %1583 = vmatpush1.msra.mxu0 0.0
    %1584 = vmatprep.subr.mxu0 0.0
    %1585 = vmatpush1.msra.mxu0 0.0
    %1586 = vmatprep.subr.mxu0 0.0
    %1587 = vmatpush1.msra.mxu0 0.0
    %1588 = vmatprep.subr.mxu0 0.0
    %1589 = vmatpush1.msra.mxu0 0.0
    %1590 = vmatprep.subr.mxu0 0.0
    %1591 = vmatpush1.msra.mxu0 0.0
    %1592 = vmatprep.subr.mxu0 0.0
    %1593 = vmatpush1.msra.mxu0 0.0
    %1594 = vmatprep.subr.mxu0 0.0
    %1595 = vmatpush1.msra.mxu0 0.0
    %1596 = vmatprep.subr.mxu0 0.0
    %1597 = vmatpush1.msra.mxu0 0.0
    %1598 = vmatprep.subr.mxu0 0.0
    %1599 = vmatpush1.msra.mxu0 0.0
    %1600 = vmatprep.subr.mxu0 0.0
    %1601 = vmatpush1.msra.mxu0 0.0
    %1602 = vmatprep.subr.mxu0 0.0
    %1603 = vmatpush1.msra.mxu0 0.0
    %1604 = vmatprep.subr.mxu0 0.0
    %1605 = vmatpush1.msra.mxu0 0.0
    %1606 = vmatprep.subr.mxu0 0.0
    %1607 = vmatpush1.msra.mxu0 0.0
    %1608 = vmatprep.subr.mxu0 0.0
    %1609 = vmatpush1.msra.mxu0 0.0
    %1610 = vmatprep.subr.mxu0 0.0
    %1611 = vmatpush1.msra.mxu0 0.0
    %1612 = vmatprep.subr.mxu0 0.0
    %1613 = vmatpush1.msra.mxu0 0.0
    %1614 = vmatprep.subr.mxu0 0.0
    %1615 = vmatpush1.msra.mxu0 0.0
    %1616 = vmatprep.subr.mxu0 0.0
    %1617 = vmatpush1.msra.mxu0 0.0
    %1618 = vmatprep.subr.mxu0 0.0
    %1619 = vmatpush1.msra.mxu0 0.0
    %1620 = vmatprep.subr.mxu0 0.0
    %1621 = vmatpush1.msra.mxu0 0.0
    %1622 = vmatprep.subr.mxu0 0.0
    %1623 = vmatpush1.msra.mxu0 0.0
    %1624 = vmatprep.subr.mxu0 0.0
    %1625 = vmatpush1.msra.mxu0 0.0
    %1626 = vmatprep.subr.mxu0 0.0
    %1627 = vmatpush1.msra.mxu0 0.0
    %1628 = vmatprep.subr.mxu0 0.0
    %1629 = vmatpush1.msra.mxu0 0.0
    %1630 = vmatprep.subr.mxu0 0.0
    %1631 = vmatpush1.msra.mxu0 0.0
    %1632 = vmatprep.mubr.f32.mxu0 0.0
    %v1633 = vand.u32 %v1269, 4294901760
    %v1634 = vsub.f32 %v1269, %v1633
    %v1635 = vand.u32 %v1634, 4294901760
    %1636 = vmatmul.mubr.f32.gmra.mrb[0].mxu0 %v1635
    %v1637 = vpop.f32.mrb[0].mxu0
    %v1638 = vadd.f32 %v1552, %v1637
    %v1639 = vpop.f32.mrb[0].mxu0
    %1640 = vmatprep.mubr.f32.mxu0 0.0
    %v1641 = vand.u32 %v1271, 4294901760
    %v1642 = vsub.f32 %v1271, %v1641
    %v1643 = vand.u32 %v1642, 4294901760
    %1644 = vmatmul.mubr.f32.gmra.mrb[0].mxu0 %v1643
    %v1645 = vpop.f32.mrb[0].mxu0
    %v1646 = vadd.f32 %v1559, %v1645
    %v1647 = vpop.f32.mrb[0].mxu0
    %1648 = vdwg.mxu0
    %1649 = vmatprep.subr.mxu0 0.0
    %v1650 = vand.u32 %v1243, 4294901760
    %v1651 = vsub.f32 %v1243, %v1650
    %v1652 = vand.u32 %v1651, 4294901760
    %1653 = vmatpush1.msra.mxu0 %v1652
    %1654 = vmatprep.subr.mxu0 0.0
    %v1655 = vand.u32 %v1244, 4294901760
    %v1656 = vsub.f32 %v1244, %v1655
    %v1657 = vand.u32 %v1656, 4294901760
    %1658 = vmatpush1.msra.mxu0 %v1657
    %1659 = vmatprep.subr.mxu0 0.0
    %v1660 = vand.u32 %v1248, 4294901760
    %v1661 = vsub.f32 %v1248, %v1660
    %v1662 = vand.u32 %v1661, 4294901760
    %1663 = vmatpush1.msra.mxu0 %v1662
    %1664 = vmatprep.subr.mxu0 0.0
    %v1665 = vand.u32 %v1250, 4294901760
    %v1666 = vsub.f32 %v1250, %v1665
    %v1667 = vand.u32 %v1666, 4294901760
    %1668 = vmatpush1.msra.mxu0 %v1667
    %1669 = vmatprep.subr.mxu0 0.0
    %v1670 = vand.u32 %v1254, 4294901760
    %v1671 = vsub.f32 %v1254, %v1670
    %v1672 = vand.u32 %v1671, 4294901760
    %1673 = vmatpush1.msra.mxu0 %v1672
    %1674 = vmatprep.subr.mxu0 0.0
    %v1675 = vand.u32 %v1256, 4294901760
    %v1676 = vsub.f32 %v1256, %v1675
    %v1677 = vand.u32 %v1676, 4294901760
    %1678 = vmatpush1.msra.mxu0 %v1677
    %1679 = vmatprep.subr.mxu0 0.0
    %1680 = vmatpush1.msra.mxu0 0.0
    %1681 = vmatprep.subr.mxu0 0.0
    %1682 = vmatpush1.msra.mxu0 0.0
    %1683 = vmatprep.subr.mxu0 0.0
    %1684 = vmatpush1.msra.mxu0 0.0
    %1685 = vmatprep.subr.mxu0 0.0
    %1686 = vmatpush1.msra.mxu0 0.0
    %1687 = vmatprep.subr.mxu0 0.0
    %1688 = vmatpush1.msra.mxu0 0.0
    %1689 = vmatprep.subr.mxu0 0.0
    %1690 = vmatpush1.msra.mxu0 0.0
    %1691 = vmatprep.subr.mxu0 0.0
    %1692 = vmatpush1.msra.mxu0 0.0
    %1693 = vmatprep.subr.mxu0 0.0
    %1694 = vmatpush1.msra.mxu0 0.0
    %1695 = vmatprep.subr.mxu0 0.0
    %1696 = vmatpush1.msra.mxu0 0.0
    %1697 = vmatprep.subr.mxu0 0.0
    %1698 = vmatpush1.msra.mxu0 0.0
    %1699 = vmatprep.subr.mxu0 0.0
    %1700 = vmatpush1.msra.mxu0 0.0
    %1701 = vmatprep.subr.mxu0 0.0
    %1702 = vmatpush1.msra.mxu0 0.0
    %1703 = vmatprep.subr.mxu0 0.0
    %1704 = vmatpush1.msra.mxu0 0.0
    %1705 = vmatprep.subr.mxu0 0.0
    %1706 = vmatpush1.msra.mxu0 0.0
    %1707 = vmatprep.subr.mxu0 0.0
    %1708 = vmatpush1.msra.mxu0 0.0
    %1709 = vmatprep.subr.mxu0 0.0
    %1710 = vmatpush1.msra.mxu0 0.0
    %1711 = vmatprep.subr.mxu0 0.0
    %1712 = vmatpush1.msra.mxu0 0.0
    %1713 = vmatprep.subr.mxu0 0.0
    %1714 = vmatpush1.msra.mxu0 0.0
    %1715 = vmatprep.subr.mxu0 0.0
    %1716 = vmatpush1.msra.mxu0 0.0
    %1717 = vmatprep.subr.mxu0 0.0
    %1718 = vmatpush1.msra.mxu0 0.0
    %1719 = vmatprep.subr.mxu0 0.0
    %1720 = vmatpush1.msra.mxu0 0.0
    %1721 = vmatprep.subr.mxu0 0.0
    %1722 = vmatpush1.msra.mxu0 0.0
    %1723 = vmatprep.subr.mxu0 0.0
    %1724 = vmatpush1.msra.mxu0 0.0
    %1725 = vmatprep.subr.mxu0 0.0
    %1726 = vmatpush1.msra.mxu0 0.0
    %1727 = vmatprep.subr.mxu0 0.0
    %1728 = vmatpush1.msra.mxu0 0.0
    %1729 = vmatprep.subr.mxu0 0.0
    %1730 = vmatpush1.msra.mxu0 0.0
    %1731 = vmatprep.mubr.f32.mxu0 0.0
    %v1732 = vand.u32 %v1269, 4294901760
    %1733 = vmatmul.mubr.f32.gmra.mrb[0].mxu0 %v1732
    %v1734 = vpop.f32.mrb[0].mxu0
    %v1735 = vadd.f32 %v1638, %v1734
    %v1736 = vpop.f32.mrb[0].mxu0
    %1737 = vmatprep.mubr.f32.mxu0 0.0
    %v1738 = vand.u32 %v1271, 4294901760
    %1739 = vmatmul.mubr.f32.gmra.mrb[0].mxu0 %v1738
    %v1740 = vpop.f32.mrb[0].mxu0
    %v1741 = vadd.f32 %v1646, %v1740
    %v1742 = vpop.f32.mrb[0].mxu0
    %1743 = vdwg.mxu0
    %1744 = vmatprep.subr.mxu0 0.0
    %v1745 = vand.u32 %v1243, 4294901760
    %1746 = vmatpush1.msra.mxu0 %v1745
    %1747 = vmatprep.subr.mxu0 0.0
    %v1748 = vand.u32 %v1244, 4294901760
    %1749 = vmatpush1.msra.mxu0 %v1748
    %1750 = vmatprep.subr.mxu0 0.0
    %v1751 = vand.u32 %v1248, 4294901760
    %1752 = vmatpush1.msra.mxu0 %v1751
    %1753 = vmatprep.subr.mxu0 0.0
    %v1754 = vand.u32 %v1250, 4294901760
    %1755 = vmatpush1.msra.mxu0 %v1754
    %1756 = vmatprep.subr.mxu0 0.0
    %v1757 = vand.u32 %v1254, 4294901760
    %1758 = vmatpush1.msra.mxu0 %v1757
    %1759 = vmatprep.subr.mxu0 0.0
    %v1760 = vand.u32 %v1256, 4294901760
    %1761 = vmatpush1.msra.mxu0 %v1760
    %1762 = vmatprep.subr.mxu0 0.0
    %1763 = vmatpush1.msra.mxu0 0.0
    %1764 = vmatprep.subr.mxu0 0.0
    %1765 = vmatpush1.msra.mxu0 0.0
    %1766 = vmatprep.subr.mxu0 0.0
    %1767 = vmatpush1.msra.mxu0 0.0
    %1768 = vmatprep.subr.mxu0 0.0
    %1769 = vmatpush1.msra.mxu0 0.0
    %1770 = vmatprep.subr.mxu0 0.0
    %1771 = vmatpush1.msra.mxu0 0.0
    %1772 = vmatprep.subr.mxu0 0.0
    %1773 = vmatpush1.msra.mxu0 0.0
    %1774 = vmatprep.subr.mxu0 0.0
    %1775 = vmatpush1.msra.mxu0 0.0
    %1776 = vmatprep.subr.mxu0 0.0
    %1777 = vmatpush1.msra.mxu0 0.0
    %1778 = vmatprep.subr.mxu0 0.0
    %1779 = vmatpush1.msra.mxu0 0.0
    %1780 = vmatprep.subr.mxu0 0.0
    %1781 = vmatpush1.msra.mxu0 0.0
    %1782 = vmatprep.subr.mxu0 0.0
    %1783 = vmatpush1.msra.mxu0 0.0
    %1784 = vmatprep.subr.mxu0 0.0
    %1785 = vmatpush1.msra.mxu0 0.0
    %1786 = vmatprep.subr.mxu0 0.0
    %1787 = vmatpush1.msra.mxu0 0.0
    %1788 = vmatprep.subr.mxu0 0.0
    %1789 = vmatpush1.msra.mxu0 0.0
    %1790 = vmatprep.subr.mxu0 0.0
    %1791 = vmatpush1.msra.mxu0 0.0
    %1792 = vmatprep.subr.mxu0 0.0
    %1793 = vmatpush1.msra.mxu0 0.0
    %1794 = vmatprep.subr.mxu0 0.0
    %1795 = vmatpush1.msra.mxu0 0.0
    %1796 = vmatprep.subr.mxu0 0.0
    %1797 = vmatpush1.msra.mxu0 0.0
    %1798 = vmatprep.subr.mxu0 0.0
    %1799 = vmatpush1.msra.mxu0 0.0
    %1800 = vmatprep.subr.mxu0 0.0
    %1801 = vmatpush1.msra.mxu0 0.0
    %1802 = vmatprep.subr.mxu0 0.0
    %1803 = vmatpush1.msra.mxu0 0.0
    %1804 = vmatprep.subr.mxu0 0.0
    %1805 = vmatpush1.msra.mxu0 0.0
    %1806 = vmatprep.subr.mxu0 0.0
    %1807 = vmatpush1.msra.mxu0 0.0
    %1808 = vmatprep.subr.mxu0 0.0
    %1809 = vmatpush1.msra.mxu0 0.0
    %1810 = vmatprep.subr.mxu0 0.0
    %1811 = vmatpush1.msra.mxu0 0.0
    %1812 = vmatprep.subr.mxu0 0.0
    %1813 = vmatpush1.msra.mxu0 0.0
    %1814 = vmatprep.mubr.f32.mxu0 0.0
    %v1815 = vand.u32 %v1269, 4294901760
    %1816 = vmatmul.mubr.f32.gmra.mrb[0].mxu0 %v1815
    %v1817 = vpop.f32.mrb[0].mxu0
    %v1818 = vadd.f32 %v1735, %v1817
    %v1819 = vpop.f32.mrb[0].mxu0
    %1820 = vmatprep.mubr.f32.mxu0 0.0
    %v1821 = vand.u32 %v1271, 4294901760
    %1822 = vmatmul.mubr.f32.gmra.mrb[0].mxu0 %v1821
    %v1823 = vpop.f32.mrb[0].mxu0
    %v1824 = vadd.f32 %v1741, %v1823
    %v1825 = vpop.f32.mrb[0].mxu0
    %1826 = vdwg.mxu0
    %1827 = vset.pattern.permute.xlu0 0
    %1828 = vperm.xlu0 %1827, %v34
    %v1829 = vpop.permute.xlu0 %1828
    %1831 = vset.pattern.permute.xlu0 0
    %1832 = vperm.xlu0 %1831, %v35
    %v1833 = vpop.permute.xlu0 %1832
    %v1835 = vadd.f32 %v1818, %v1829
    %v1836 = vadd.f32 %v1824, %v1833
    %v1837 = vsel %vm1242, %v1835, 0.0
    %1838 = vadd.xlane.f32.xlu0 %v1837
    %v1839 = vpop.xlane.xlu0 %1838
    %v1840 = vsel %vm1242, %v1836, 0.0
    %1841 = vadd.xlane.f32.xlu0 %v1840
    %v1842 = vpop.xlane.xlu0 %1841
    %v1843 = vrcp.pop 7.0
    %v1844 = vmul.f32 %v1839, %v1843
    %v1845 = vmul.f32 %v1842, %v1843
    %v1846 = vsub.f32 %v1835, %v1844
    %v1847 = vsub.f32 %v1836, %v1845
    %v1848 = vmul.f32 %v1846, %v1846
    %v1849 = vmul.f32 %v1847, %v1847
    %v1850 = vsel %vm1242, %v1848, 0.0
    %1851 = vadd.xlane.f32.xlu0 %v1850
    %v1852 = vpop.xlane.xlu0 %1851
    %v1853 = vsel %vm1242, %v1849, 0.0
    %1854 = vadd.xlane.f32.xlu0 %v1853
    %v1855 = vpop.xlane.xlu0 %1854
    %v1856 = vmul.f32 %v1852, %v1843
    %v1857 = vmul.f32 %v1855, %v1843
    %v1858 = vadd.f32 %v1856, 1e-05
    %v1859 = vadd.f32 %v1857, 1e-05
    %v1860 = vrsqrt.pop %v1858
    %v1861 = vrsqrt.pop %v1859
    %v1862 = vmul.f32 %v1846, %v1860
    %v1863 = vmul.f32 %v1847, %v1861
    %v1864 = vlaneseq
    %v1865 = vshrl.u32 %v1864, 7
    %v1866 = vsub.s32 0, %v1865
    %v1867 = vrot.slane %v31, %v1866
    %v1868 = vmul.f32 %v1862, %v1867
    %v1869 = vmul.f32 %v1863, %v1867
    %1871 = vrot.lane.b32.xlu0 %v1867, 121
    %v1872 = vpop.permute.xlu0 %1871
    %v1874 = vadd.f32 %v1868, %v1872
    %v1875 = vadd.f32 %v1869, %v1872
    %1876 = vst.msk [vmem:[%s2] sm:$0xff] %vm1242, %v1874
    %1877 = vst.msk [vmem:[%s2 + $0x8] sm:$0xff] %vm1242, %v1875
    // Predicated region
    $region14: #{residual_block_forward.1} parent=1 // pred_check
      _
    $region15: #{residual_block_forward.1} parent=1 // pred_check_branch
      %1879 = sbr.rel (0) target = $region17
    $region16: #{residual_block_forward.1} parent=1 // pred_region
      _
    $region17: #{residual_block_forward.1} parent=1 // pred_fallthru
      _
    // Predicated region
    $region18: #{residual_block_forward.1} parent=1 // pred_check
      _
    $region19: #{residual_block_forward.1} parent=1 // pred_check_branch
      %1881 = sbr.rel (0) target = $region21
    $region20: #{residual_block_forward.1} parent=1 // pred_region
      _
    $region21: #{residual_block_forward.1} parent=1 // pred_fallthru
      _
    %1882 = vsyncpa [#allocation3], 1

</llo_original>
